<compile_context>
chip_gen: v5e
topology: v5e:2x2
jax: 0.10.0
libtpu: 0.0.40
codegen_flags: <defaults>
</compile_context>

<pallas_src>
import math
import jax
import jax.numpy as jnp
from jax import lax
from jax.experimental import pallas as pl
from jax.experimental.pallas import tpu as pltpu


# ----------------------------- in-kernel helpers -----------------------------

_SQRT_2_OVER_PI = 0.7978845608028654


def _gelu(x):
    # tanh-form GELU (max |dev| from exact erf-GELU ~3e-4); tanh runs on the EUP
    # slot instead of burning ~12 VALU ops/elem on an erf polynomial.
    return 0.5 * x * (1.0 + jnp.tanh(_SQRT_2_OVER_PI * (x + 0.044715 * x * x * x)))


def _layernorm(x, w, b, eps=1e-5):
    mu = jnp.mean(x, axis=-1, keepdims=True)
    var = jnp.mean((x - mu) ** 2, axis=-1, keepdims=True)
    return (x - mu) * lax.rsqrt(var + eps) * w + b


# vector-slab row indices
(R_BQ, R_BK, R_BV, R_BO, R_LN1W, R_LN1B, R_FFB2, R_LN2W, R_LN2B,
 R_SWB1, R_SWW2, R_FSB1, R_FSW2_0, R_FSW2_1, R_SFB1, R_SFLNW, R_SFLNB,
 R_OLNW, R_OLNB, R_SCAL) = range(20)
N_VEC_ROWS = 20


# ------------------------------- kernel body ---------------------------------

def _make_kernel(S, B, D, H):
    N = S * B
    Dh = D // H
    D2 = D // 2

    def kernel(x_ref, wqkvo_ref, wsmall_ref, wsf_ref,
               wff1_ref, ffb1_ref, wff2_ref, vec_ref,
               o_ref, h1_ref, acc_ref):
        f32 = jnp.float32
        bf16 = jnp.bfloat16
        k = pl.program_id(0)
        last = pl.num_programs(0) - 1

        vec = vec_ref[...]                          # (N_VEC_ROWS, D)

        def vrow(i, n=D):
            return vec[i:i + 1, 0:n]                # (1, n)

        # -------- phase 1 (k == 0): attention + residual + norm1 --------
        @pl.when(k == 0)
        def _():
            x = x_ref[...]                          # (N, D), seq-first rows r = s*B + b
            wqkvo = wqkvo_ref[...]                  # (D, 4D) = 128 lanes exactly
            # fused full-width projection; the Wo columns of this product are
            # unused MXU filler (the MXU pushes 128 lanes regardless).
            xproj = jnp.dot(x, wqkvo, preferred_element_type=f32)      # (N, 4D)
            q = xproj[:, 0:D] + vrow(R_BQ)          # 1/sqrt(Dh) pre-folded into Wq/bq
            kk = xproj[:, D:2 * D] + vrow(R_BK)
            v = xproj[:, 2 * D:3 * D] + vrow(R_BV)
            wo = wqkvo[:, 3 * D:4 * D]              # (D, D)

            # block-diagonal batch mask in seq-first layout: r attends c iff r%B == c%B
            rows = lax.broadcasted_iota(jnp.int32, (N, N), 0)
            cols = lax.broadcasted_iota(jnp.int32, (N, N), 1)
            if B & (B - 1) == 0:
                same = (rows & (B - 1)) == (cols & (B - 1))
            else:
                same = (rows % B) == (cols % B)
            mask = jnp.where(same, 0.0, -1e30).astype(f32)

            # per-head attention; output projection accumulated per head through
            # sublane-aligned row slices of Wo (no lane-dim concat).
            src = x + vrow(R_BO)
            for h in range(H):
                sl = slice(h * Dh, (h + 1) * Dh)
                qh, kh, vh = q[:, sl], kk[:, sl], v[:, sl]
                s = lax.dot_general(qh, kh, (((1,), (1,)), ((), ())),
                                    preferred_element_type=f32) + mask
                m = jnp.max(s, axis=-1, keepdims=True)
                e = jnp.exp(s - m)
                p = e * pl.reciprocal(jnp.sum(e, axis=-1, keepdims=True), approx=True)
                oh = jnp.dot(p, vh, preferred_element_type=f32)         # (N, Dh)
                src = src + jnp.dot(oh, wo[sl, :], preferred_element_type=f32)

            h1_ref[...] = _layernorm(src, vrow(R_LN1W), vrow(R_LN1B))
            acc_ref[...] = jnp.zeros_like(acc_ref)

        # -------- phase 2 (every step): one FF chunk, f32 accumulation --------
        h1 = h1_ref[...]                                                # (N, D)
        a1 = jnp.dot(h1.astype(bf16), wff1_ref[...],
                     preferred_element_type=f32) + ffb1_ref[...]        # (N, TFF)
        g1 = _gelu(a1)
        acc_ref[...] += lax.dot_general(g1.astype(bf16), wff2_ref[...],
                                        (((1,), (1,)), ((), ())),
                                        preferred_element_type=f32)     # (N, D)

        # -------- phase 3 (k == last): tail + store --------
        @pl.when(k == last)
        def _():
            ff = acc_ref[...] + vrow(R_FFB2)
            fine = _layernorm(h1_ref[...] + ff, vrow(R_LN2W), vrow(R_LN2B))

            wsmall = wsmall_ref[...]                                    # (D, 2*D2)

            # ---- short_weighting (seq_len <= 16 branch) ----
            swh = _gelu(jnp.dot(fine, wsmall[:, 0:D2],
                                preferred_element_type=f32) + vrow(R_SWB1, D2))
            wlog = jnp.sum(swh * vrow(R_SWW2, D2), axis=-1, keepdims=True) \
                + vec[R_SCAL:R_SCAL + 1, 0:1]
            fine_w = fine * jax.nn.sigmoid(wlog)    # reweighted fine == coarse_upsampled

            # ---- feature_selector on cat([fine_w, fine_w]) -> merged first layer ----
            fsh = _gelu(jnp.dot(fine_w, wsmall[:, D2:2 * D2],
                                preferred_element_type=f32) + vrow(R_FSB1, D2))
            l0 = jnp.sum(fsh * vrow(R_FSW2_0, D2), axis=-1, keepdims=True) \
                + vec[R_SCAL:R_SCAL + 1, 1:2]
            l1 = jnp.sum(fsh * vrow(R_FSW2_1, D2), axis=-1, keepdims=True) \
                + vec[R_SCAL:R_SCAL + 1, 2:3]
            m01 = jnp.maximum(l0, l1)
            e0, e1 = jnp.exp(l0 - m01), jnp.exp(l1 - m01)
            inv = pl.reciprocal(e0 + e1, approx=True)
            # selected = fine_w*1.5*p0 + coarse*0.5*p1, with coarse == fine_w
            selected = fine_w * ((1.5 * e0 + 0.5 * e1) * inv)

            # ---- scale_fusion on cat([selected, fine_w]) as two row-slab dots ----
            wsf = wsf_ref[...]                                          # (2D, D)
            sg = _gelu(jnp.dot(selected, wsf[0:D, :], preferred_element_type=f32)
                       + jnp.dot(fine_w, wsf[D:2 * D, :], preferred_element_type=f32)
                       + vrow(R_SFB1))
            fused = _layernorm(sg, vrow(R_SFLNW), vrow(R_SFLNB))

            # ---- final LayerNorm; Dropout is identity in eval mode ----
            o_ref[...] = _layernorm(fused, vrow(R_OLNW), vrow(R_OLNB))

    return kernel


# ------------------------------ parameter setup -------------------------------

def init_params(key, D, H, FF=2048):
    """Deterministic synthetic parameters (weights pre-transposed for x @ W)."""
    D2 = D // 2
    ks = iter(jax.random.split(key, 40))

    def w(shape, scale=0.05):
        return scale * jax.random.normal(next(ks), shape, dtype=jnp.float32)

    ones = lambda s: jnp.ones(s, jnp.float32)
    zeros = lambda s: jnp.zeros(s, jnp.float32)
    return {
        # fine TransformerEncoderLayer (post-norm, gelu, dim_feedforward=FF)
        "wq_t": w((D, D)), "wk_t": w((D, D)), "wv_t": w((D, D)),
        "bq": w((D,), 0.01), "bk": w((D,), 0.01), "bv": w((D,), 0.01),
        "wo_t": w((D, D)), "bo": w((D,), 0.01),
        "ln1_w": ones((D,)), "ln1_b": zeros((D,)),
        "ff_w1t": w((D, FF)), "ff_b1": w((FF,), 0.01),
        "ff_w2t": w((FF, D)), "ff_b2": w((D,), 0.01),
        "ln2_w": ones((D,)), "ln2_b": zeros((D,)),
        # short_weighting
        "sw_w1t": w((D, D2)), "sw_b1": w((D2,), 0.01),
        "sw_w2t": w((D2, 1)), "sw_b2": w((1,), 0.01),
        # feature_selector (Linear(2D, D2) split into fine/coarse halves)
        "fs_w1a_t": w((D, D2)), "fs_w1b_t": w((D, D2)), "fs_b1": w((D2,), 0.01),
        "fs_w2t": w((D2, 2)), "fs_b2": w((2,), 0.01),
        # scale_fusion (Linear(2D, D) split) + its LayerNorm
        "sf_w1a_t": w((D, D)), "sf_w1b_t": w((D, D)), "sf_b1": w((D,), 0.01),
        "sf_ln_w": ones((D,)), "sf_ln_b": zeros((D,)),
        # final layer_norm
        "out_ln_w": ones((D,)), "out_ln_b": zeros((D,)),
    }


def pack_params(p, D, H, FF=2048):
    """Pack the 32 module parameters into a handful of DMA-friendly slabs."""
    D2 = D // 2
    Dh = D // H
    scale = 1.0 / math.sqrt(Dh)

    # fold the 1/sqrt(Dh) attention scale into the Q projection (exact algebra)
    wq = p["wq_t"] * scale
    bq = p["bq"] * scale

    # (D, 4D): [Wq|Wk|Wv|Wo] — exactly one 128-lane slab when D = 32.
    w_qkvo = jnp.concatenate([wq, p["wk_t"], p["wv_t"], p["wo_t"]],
                             axis=1).astype(jnp.float32)
    # (D, 2*D2): [short_weighting W1 | merged feature_selector W1]
    w_small = jnp.concatenate([p["sw_w1t"], p["fs_w1a_t"] + p["fs_w1b_t"]],
                              axis=1).astype(jnp.float32)
    # scale_fusion first layer as a single (2D, D) row-stacked weight
    w_sf = jnp.concatenate([p["sf_w1a_t"], p["sf_w1b_t"]], axis=0).astype(jnp.float32)

    # feed-forward weights: bf16, both stored lane-dense as (D, FF)
    w_ff1 = p["ff_w1t"].astype(jnp.bfloat16)          # (D, FF), used as x @ W1
    ff_b1 = p["ff_b1"].reshape(1, FF).astype(jnp.float32)
    w_ff2 = p["ff_w2t"].T.astype(jnp.bfloat16)        # (D, FF), contracted on FF dim

    def row(v):
        v = jnp.asarray(v, jnp.float32).reshape(-1)
        return jnp.pad(v, (0, D - v.shape[0]))

    vec_rows = [None] * N_VEC_ROWS
    vec_rows[R_BQ] = row(bq)
    vec_rows[R_BK] = row(p["bk"])
    vec_rows[R_BV] = row(p["bv"])
    vec_rows[R_BO] = row(p["bo"])
    vec_rows[R_LN1W] = row(p["ln1_w"])
    vec_rows[R_LN1B] = row(p["ln1_b"])
    vec_rows[R_FFB2] = row(p["ff_b2"])
    vec_rows[R_LN2W] = row(p["ln2_w"])
    vec_rows[R_LN2B] = row(p["ln2_b"])
    vec_rows[R_SWB1] = row(p["sw_b1"])
    vec_rows[R_SWW2] = row(p["sw_w2t"].reshape(-1))
    vec_rows[R_FSB1] = row(p["fs_b1"])
    vec_rows[R_FSW2_0] = row(p["fs_w2t"][:, 0])
    vec_rows[R_FSW2_1] = row(p["fs_w2t"][:, 1])
    vec_rows[R_SFB1] = row(p["sf_b1"])
    vec_rows[R_SFLNW] = row(p["sf_ln_w"])
    vec_rows[R_SFLNB] = row(p["sf_ln_b"])
    vec_rows[R_OLNW] = row(p["out_ln_w"])
    vec_rows[R_OLNB] = row(p["out_ln_b"])
    vec_rows[R_SCAL] = row(jnp.concatenate([p["sw_b2"], p["fs_b2"]]))  # [sw_b2, fs_b2_0, fs_b2_1, 0...]
    vecs = jnp.stack(vec_rows, axis=0)                # (N_VEC_ROWS, D)

    return {"w_qkvo": w_qkvo, "w_small": w_small, "w_sf": w_sf,
            "w_ff1": w_ff1, "ff_b1": ff_b1, "w_ff2": w_ff2, "vecs": vecs}


# --------------------------- pure-JAX reference --------------------------------

def reference_forward(features, p, H):
    """f32 reference of HierarchicalContextEncoder.forward for seq_len <= 16."""
    S, B, D = features.shape
    Dh = D // H
    x = features.astype(jnp.float32)

    def ln(t, w, b, eps=1e-5):
        mu = t.mean(-1, keepdims=True)
        var = ((t - mu) ** 2).mean(-1, keepdims=True)
        return (t - mu) / jnp.sqrt(var + eps) * w + b

    gelu = lambda t: jax.nn.gelu(t, approximate=False)

    # fine TransformerEncoderLayer (post-norm, eval mode => dropout identity)
    q = x @ p["wq_t"] + p["bq"]
    k = x @ p["wk_t"] + p["bk"]
    v = x @ p["wv_t"] + p["bv"]
    split = lambda t: t.reshape(S, B, H, Dh)
    qh, kh, vh = split(q), split(k), split(v)
    scores = jnp.einsum("sbhd,tbhd->bhst", qh, kh) / math.sqrt(Dh)
    probs = jax.nn.softmax(scores, axis=-1)
    ctx = jnp.einsum("bhst,tbhd->sbhd", probs, vh).reshape(S, B, D)
    src = x + (ctx @ p["wo_t"] + p["bo"])
    h1 = ln(src, p["ln1_w"], p["ln1_b"])
    ff = gelu(h1 @ p["ff_w1t"] + p["ff_b1"]) @ p["ff_w2t"] + p["ff_b2"]
    fine = ln(h1 + ff, p["ln2_w"], p["ln2_b"])

    # seq_len <= 16 branch
    wgt = jax.nn.sigmoid(gelu(fine @ p["sw_w1t"] + p["sw_b1"]) @ p["sw_w2t"] + p["sw_b2"])
    fine_w = fine * wgt
    coarse = fine_w
    comb_h = gelu(fine_w @ p["fs_w1a_t"] + coarse @ p["fs_w1b_t"] + p["fs_b1"])
    sel = jax.nn.softmax(comb_h @ p["fs_w2t"] + p["fs_b2"], axis=-1) * jnp.array([1.5, 0.5])
    selected = fine_w * sel[..., 0:1] + coarse * sel[..., 1:2]
    sg = gelu(selected @ p["sf_w1a_t"] + fine_w @ p["sf_w1b_t"] + p["sf_b1"])
    fused = ln(sg, p["sf_ln_w"], p["sf_ln_b"])
    return ln(fused, p["out_ln_w"], p["out_ln_b"])


# --------------------------------- wrapper ------------------------------------

def hierarchical_context_encoder(features, packed, num_heads, ff_dim=2048, tile_ff=512):
    S, B, D = features.shape
    assert S <= 16, "only the seq_len <= 16 branch is implemented"
    assert D % num_heads == 0 and D % 2 == 0
    N = S * B
    FF = ff_dim
    TFF = min(tile_ff, FF)
    assert FF % TFF == 0 and TFF % 128 == 0
    n_steps = FF // TFF
    D2 = D // 2

    # seq-first row-major layout (row r = s*B + b): a free reshape, no transposes
    x2 = features.reshape(N, D).astype(jnp.float32)

    kernel = _make_kernel(S, B, D, num_heads)
    full2 = lambda k: (0, 0)                 # resident blocks: DMA'd once, reused
    in_specs = [
        pl.BlockSpec((N, D), full2),                      # x
        pl.BlockSpec((D, 4 * D), full2),                  # Wq|Wk|Wv|Wo
        pl.BlockSpec((D, 2 * D2), full2),                 # small first-layer weights
        pl.BlockSpec((2 * D, D), full2),                  # scale_fusion weight
        pl.BlockSpec((D, TFF), lambda k: (0, k)),         # FF W1 chunk (bf16)
        pl.BlockSpec((1, TFF), lambda k: (0, k)),         # FF b1 chunk
        pl.BlockSpec((D, TFF), lambda k: (0, k)),         # FF W2 chunk (bf16, lane-dense)
        pl.BlockSpec((N_VEC_ROWS, D), full2),             # bias / LN vector slab
    ]
    out2 = pl.pallas_call(
        kernel,
        grid=(n_steps,),
        in_specs=in_specs,
        out_specs=pl.BlockSpec((N, D), full2),
        out_shape=jax.ShapeDtypeStruct((N, D), jnp.float32),
        scratch_shapes=[pltpu.VMEM((N, D), jnp.float32),   # h1 (norm1 output)
                        pltpu.VMEM((N, D), jnp.float32)],  # FF accumulator
        compiler_params=pltpu.CompilerParams(
            dimension_semantics=("arbitrary",)),
    )(x2, packed["w_qkvo"], packed["w_small"], packed["w_sf"],
      packed["w_ff1"], packed["ff_b1"], packed["w_ff2"], packed["vecs"])
    return out2.reshape(S, B, D)             # back to (seq, batch, dim)


# ----------------------------------- main --------------------------------------

if __name__ == "__main__":
    S, B, D, H = 8, 2, 32, 4                 # seq, batch, embedding_dim, num_heads
    FF = 2048                                 # TransformerEncoderLayer default dim_feedforward
    key = jax.random.PRNGKey(0)
    k_in, k_par = jax.random.split(key)
    features = jax.random.normal(k_in, (S, B, D), dtype=jnp.float32)
    params = init_params(k_par, D, H, FF)
    packed = pack_params(params, D, H, FF)

    out = hierarchical_context_encoder(features, packed, num_heads=H, ff_dim=FF)
    out = jax.block_until_ready(out)
    assert out.shape == (S, B, D) and out.dtype == jnp.float32
    assert bool(jnp.all(jnp.isfinite(out)))

    # correctness vs a pure-JAX f32 reference of the module (bf16 FF weights,
    # tanh-GELU and approx reciprocal account for the small tolerance)
    ref = jax.block_until_ready(reference_forward(features, params, H))
    max_err = float(jnp.max(jnp.abs(out - ref)))
    assert max_err < 0.1, f"kernel deviates from reference: max |err| = {max_err}"

    print("KERNEL_OK")
</pallas_src>

<mosaic_0001>
module attributes {stable_mosaic.version = 11 : i64} {
  func.func @kernel(%arg0: i32, %arg1: memref<16x32xf32, #tpu.memory_space<vmem>>, %arg2: memref<32x128xf32, #tpu.memory_space<vmem>>, %arg3: memref<32x32xf32, #tpu.memory_space<vmem>>, %arg4: memref<64x32xf32, #tpu.memory_space<vmem>>, %arg5: memref<32x512xbf16, #tpu.memory_space<vmem>>, %arg6: memref<1x512xf32, #tpu.memory_space<vmem>>, %arg7: memref<32x512xbf16, #tpu.memory_space<vmem>>, %arg8: memref<20x32xf32, #tpu.memory_space<vmem>>, %arg9: memref<16x32xf32, #tpu.memory_space<vmem>>, %arg10: memref<16x32xf32, #tpu.memory_space<vmem>>, %arg11: memref<16x32xf32, #tpu.memory_space<vmem>>) attributes {dimension_semantics = [#tpu.dimension_semantics<arbitrary>], iteration_bounds = array<i64: 4>, scalar_prefetch = 0 : i64, scratch_operands = 2 : i64, tpu.core_type = #tpu.core_type<tc>, window_params = [{pipeline_mode = #tpu.pipeline_mode<synchronous>, transform_indices = @transform_0, window_bounds = array<i64: 16, 32>}, {pipeline_mode = #tpu.pipeline_mode<synchronous>, transform_indices = @transform_1, window_bounds = array<i64: 32, 128>}, {pipeline_mode = #tpu.pipeline_mode<synchronous>, transform_indices = @transform_2, window_bounds = array<i64: 32, 32>}, {pipeline_mode = #tpu.pipeline_mode<synchronous>, transform_indices = @transform_3, window_bounds = array<i64: 64, 32>}, {transform_indices = @transform_4, window_bounds = array<i64: 32, 512>}, {transform_indices = @transform_5, window_bounds = array<i64: 1, 512>}, {transform_indices = @transform_6, window_bounds = array<i64: 32, 512>}, {pipeline_mode = #tpu.pipeline_mode<synchronous>, transform_indices = @transform_7, window_bounds = array<i64: 20, 32>}, {pipeline_mode = #tpu.pipeline_mode<synchronous>, transform_indices = @transform_8, window_bounds = array<i64: 16, 32>}]} {
    %c0 = arith.constant 0 : index
    %c0_0 = arith.constant 0 : index
    %0 = vector.load %arg8[%c0, %c0_0] : memref<20x32xf32, #tpu.memory_space<vmem>>, vector<20x32xf32>
    %c0_i32 = arith.constant 0 : i32
    %1 = arith.cmpi eq, %arg0, %c0_i32 : i32
    %2 = arith.extui %1 : i1 to i32
    %c0_i32_1 = arith.constant 0 : i32
    %3 = arith.cmpi ne, %2, %c0_i32_1 : i32
    scf.if %3 {
      %c0_20 = arith.constant 0 : index
      %c0_21 = arith.constant 0 : index
      %33 = vector.load %arg1[%c0_20, %c0_21] : memref<16x32xf32, #tpu.memory_space<vmem>>, vector<16x32xf32>
      %c0_22 = arith.constant 0 : index
      %c0_23 = arith.constant 0 : index
      %34 = vector.load %arg2[%c0_22, %c0_23] : memref<32x128xf32, #tpu.memory_space<vmem>>, vector<32x128xf32>
      %cst_24 = arith.constant dense<0.000000e+00> : vector<16x128xf32>
      %35 = tpu.matmul %33, %34, %cst_24 {dimension_numbers = #tpu.dot_dimension_numbers<[1], [0], [0], [1], [0, 0, 1, 1], [], []>} : vector<16x32xf32>, vector<32x128xf32>, vector<16x128xf32> -> vector<16x128xf32>
      %36 = vector.extract_strided_slice %35 {offsets = [0, 0], sizes = [16, 32], strides = [1, 1]} : vector<16x128xf32> to vector<16x32xf32>
      %37 = vector.extract_strided_slice %0 {offsets = [0, 0], sizes = [1, 32], strides = [1, 1]} : vector<20x32xf32> to vector<1x32xf32>
      %38 = vector.broadcast %37 : vector<1x32xf32> to vector<16x32xf32>
      %39 = arith.addf %36, %38 : vector<16x32xf32>
      %40 = vector.extract_strided_slice %35 {offsets = [0, 32], sizes = [16, 32], strides = [1, 1]} : vector<16x128xf32> to vector<16x32xf32>
      %41 = vector.extract_strided_slice %0 {offsets = [1, 0], sizes = [1, 32], strides = [1, 1]} : vector<20x32xf32> to vector<1x32xf32>
      %42 = vector.broadcast %41 : vector<1x32xf32> to vector<16x32xf32>
      %43 = arith.addf %40, %42 : vector<16x32xf32>
      %44 = vector.extract_strided_slice %35 {offsets = [0, 64], sizes = [16, 32], strides = [1, 1]} : vector<16x128xf32> to vector<16x32xf32>
      %45 = vector.extract_strided_slice %0 {offsets = [2, 0], sizes = [1, 32], strides = [1, 1]} : vector<20x32xf32> to vector<1x32xf32>
      %46 = vector.broadcast %45 : vector<1x32xf32> to vector<16x32xf32>
      %47 = arith.addf %44, %46 : vector<16x32xf32>
      %48 = vector.extract_strided_slice %34 {offsets = [0, 96], sizes = [32, 32], strides = [1, 1]} : vector<32x128xf32> to vector<32x32xf32>
      %49 = tpu.iota {dimensions = array<i32: 0>} : vector<16x16xi32>
      %50 = tpu.iota {dimensions = array<i32: 1>} : vector<16x16xi32>
      %c1_i32 = arith.constant 1 : i32
      %51 = vector.broadcast %c1_i32 : i32 to vector<16x16xi32>
      %52 = arith.andi %49, %51 : vector<16x16xi32>
      %c1_i32_25 = arith.constant 1 : i32
      %53 = vector.broadcast %c1_i32_25 : i32 to vector<16x16xi32>
      %54 = arith.andi %50, %53 : vector<16x16xi32>
      %55 = arith.cmpi eq, %52, %54 : vector<16x16xi32>
      %cst_26 = arith.constant 0.000000e+00 : f32
      %cst_27 = arith.constant -1.000000e+30 : f32
      %56 = vector.broadcast %cst_26 : f32 to vector<16x16xf32>
      %57 = vector.broadcast %cst_27 : f32 to vector<16x16xf32>
      %58 = arith.select %55, %56, %57 : vector<16x16xi1>, vector<16x16xf32>
      %59 = vector.extract_strided_slice %0 {offsets = [3, 0], sizes = [1, 32], strides = [1, 1]} : vector<20x32xf32> to vector<1x32xf32>
      %60 = vector.broadcast %59 : vector<1x32xf32> to vector<16x32xf32>
      %61 = arith.addf %33, %60 : vector<16x32xf32>
      %62 = vector.extract_strided_slice %39 {offsets = [0, 0], sizes = [16, 8], strides = [1, 1]} : vector<16x32xf32> to vector<16x8xf32>
      %63 = vector.extract_strided_slice %43 {offsets = [0, 0], sizes = [16, 8], strides = [1, 1]} : vector<16x32xf32> to vector<16x8xf32>
      %64 = vector.extract_strided_slice %47 {offsets = [0, 0], sizes = [16, 8], strides = [1, 1]} : vector<16x32xf32> to vector<16x8xf32>
      %cst_28 = arith.constant dense<0.000000e+00> : vector<16x16xf32>
      %65 = tpu.matmul %62, %63, %cst_28 {dimension_numbers = #tpu.dot_dimension_numbers<[1], [1], [0], [0], [0, 0, 1, 0], [], []>} : vector<16x8xf32>, vector<16x8xf32>, vector<16x16xf32> -> vector<16x16xf32>
      %66 = arith.addf %65, %58 : vector<16x16xf32>
      %cst_29 = arith.constant dense<0xFF800000> : vector<16xf32>
      %67 = vector.multi_reduction <maximumf>, %66, %cst_29 [1] : vector<16x16xf32> to vector<16xf32>
      %68 = vector.shape_cast %67 : vector<16xf32> to vector<16x1xf32>
      %69 = vector.broadcast %68 : vector<16x1xf32> to vector<16x16xf32>
      %70 = arith.subf %66, %69 : vector<16x16xf32>
      %71 = math.exp %70 : vector<16x16xf32>
      %cst_30 = arith.constant dense<0.000000e+00> : vector<16xf32>
      %72 = vector.multi_reduction <add>, %71, %cst_30 [1] : vector<16x16xf32> to vector<16xf32>
      %73 = vector.shape_cast %72 : vector<16xf32> to vector<16x1xf32>
      %74 = tpu.reciprocal %73 {approx = true} : vector<16x1xf32> -> vector<16x1xf32>
      %75 = vector.broadcast %74 : vector<16x1xf32> to vector<16x16xf32>
      %76 = arith.mulf %71, %75 : vector<16x16xf32>
      %cst_31 = arith.constant dense<0.000000e+00> : vector<16x8xf32>
      %77 = tpu.matmul %76, %64, %cst_31 {dimension_numbers = #tpu.dot_dimension_numbers<[1], [0], [0], [1], [0, 0, 1, 1], [], []>} : vector<16x16xf32>, vector<16x8xf32>, vector<16x8xf32> -> vector<16x8xf32>
      %78 = vector.extract_strided_slice %48 {offsets = [0, 0], sizes = [8, 32], strides = [1, 1]} : vector<32x32xf32> to vector<8x32xf32>
      %cst_32 = arith.constant dense<0.000000e+00> : vector<16x32xf32>
      %79 = tpu.matmul %77, %78, %cst_32 {dimension_numbers = #tpu.dot_dimension_numbers<[1], [0], [0], [1], [0, 0, 1, 1], [], []>} : vector<16x8xf32>, vector<8x32xf32>, vector<16x32xf32> -> vector<16x32xf32>
      %80 = arith.addf %61, %79 : vector<16x32xf32>
      %81 = vector.extract_strided_slice %39 {offsets = [0, 8], sizes = [16, 8], strides = [1, 1]} : vector<16x32xf32> to vector<16x8xf32>
      %82 = vector.extract_strided_slice %43 {offsets = [0, 8], sizes = [16, 8], strides = [1, 1]} : vector<16x32xf32> to vector<16x8xf32>
      %83 = vector.extract_strided_slice %47 {offsets = [0, 8], sizes = [16, 8], strides = [1, 1]} : vector<16x32xf32> to vector<16x8xf32>
      %cst_33 = arith.constant dense<0.000000e+00> : vector<16x16xf32>
      %84 = tpu.matmul %81, %82, %cst_33 {dimension_numbers = #tpu.dot_dimension_numbers<[1], [1], [0], [0], [0, 0, 1, 0], [], []>} : vector<16x8xf32>, vector<16x8xf32>, vector<16x16xf32> -> vector<16x16xf32>
      %85 = arith.addf %84, %58 : vector<16x16xf32>
      %cst_34 = arith.constant dense<0xFF800000> : vector<16xf32>
      %86 = vector.multi_reduction <maximumf>, %85, %cst_34 [1] : vector<16x16xf32> to vector<16xf32>
      %87 = vector.shape_cast %86 : vector<16xf32> to vector<16x1xf32>
      %88 = vector.broadcast %87 : vector<16x1xf32> to vector<16x16xf32>
      %89 = arith.subf %85, %88 : vector<16x16xf32>
      %90 = math.exp %89 : vector<16x16xf32>
      %cst_35 = arith.constant dense<0.000000e+00> : vector<16xf32>
      %91 = vector.multi_reduction <add>, %90, %cst_35 [1] : vector<16x16xf32> to vector<16xf32>
      %92 = vector.shape_cast %91 : vector<16xf32> to vector<16x1xf32>
      %93 = tpu.reciprocal %92 {approx = true} : vector<16x1xf32> -> vector<16x1xf32>
      %94 = vector.broadcast %93 : vector<16x1xf32> to vector<16x16xf32>
      %95 = arith.mulf %90, %94 : vector<16x16xf32>
      %cst_36 = arith.constant dense<0.000000e+00> : vector<16x8xf32>
      %96 = tpu.matmul %95, %83, %cst_36 {dimension_numbers = #tpu.dot_dimension_numbers<[1], [0], [0], [1], [0, 0, 1, 1], [], []>} : vector<16x16xf32>, vector<16x8xf32>, vector<16x8xf32> -> vector<16x8xf32>
      %97 = vector.extract_strided_slice %48 {offsets = [8, 0], sizes = [8, 32], strides = [1, 1]} : vector<32x32xf32> to vector<8x32xf32>
      %cst_37 = arith.constant dense<0.000000e+00> : vector<16x32xf32>
      %98 = tpu.matmul %96, %97, %cst_37 {dimension_numbers = #tpu.dot_dimension_numbers<[1], [0], [0], [1], [0, 0, 1, 1], [], []>} : vector<16x8xf32>, vector<8x32xf32>, vector<16x32xf32> -> vector<16x32xf32>
      %99 = arith.addf %80, %98 : vector<16x32xf32>
      %100 = vector.extract_strided_slice %39 {offsets = [0, 16], sizes = [16, 8], strides = [1, 1]} : vector<16x32xf32> to vector<16x8xf32>
      %101 = vector.extract_strided_slice %43 {offsets = [0, 16], sizes = [16, 8], strides = [1, 1]} : vector<16x32xf32> to vector<16x8xf32>
      %102 = vector.extract_strided_slice %47 {offsets = [0, 16], sizes = [16, 8], strides = [1, 1]} : vector<16x32xf32> to vector<16x8xf32>
      %cst_38 = arith.constant dense<0.000000e+00> : vector<16x16xf32>
      %103 = tpu.matmul %100, %101, %cst_38 {dimension_numbers = #tpu.dot_dimension_numbers<[1], [1], [0], [0], [0, 0, 1, 0], [], []>} : vector<16x8xf32>, vector<16x8xf32>, vector<16x16xf32> -> vector<16x16xf32>
      %104 = arith.addf %103, %58 : vector<16x16xf32>
      %cst_39 = arith.constant dense<0xFF800000> : vector<16xf32>
      %105 = vector.multi_reduction <maximumf>, %104, %cst_39 [1] : vector<16x16xf32> to vector<16xf32>
      %106 = vector.shape_cast %105 : vector<16xf32> to vector<16x1xf32>
      %107 = vector.broadcast %106 : vector<16x1xf32> to vector<16x16xf32>
      %108 = arith.subf %104, %107 : vector<16x16xf32>
      %109 = math.exp %108 : vector<16x16xf32>
      %cst_40 = arith.constant dense<0.000000e+00> : vector<16xf32>
      %110 = vector.multi_reduction <add>, %109, %cst_40 [1] : vector<16x16xf32> to vector<16xf32>
      %111 = vector.shape_cast %110 : vector<16xf32> to vector<16x1xf32>
      %112 = tpu.reciprocal %111 {approx = true} : vector<16x1xf32> -> vector<16x1xf32>
      %113 = vector.broadcast %112 : vector<16x1xf32> to vector<16x16xf32>
      %114 = arith.mulf %109, %113 : vector<16x16xf32>
      %cst_41 = arith.constant dense<0.000000e+00> : vector<16x8xf32>
      %115 = tpu.matmul %114, %102, %cst_41 {dimension_numbers = #tpu.dot_dimension_numbers<[1], [0], [0], [1], [0, 0, 1, 1], [], []>} : vector<16x16xf32>, vector<16x8xf32>, vector<16x8xf32> -> vector<16x8xf32>
      %116 = vector.extract_strided_slice %48 {offsets = [16, 0], sizes = [8, 32], strides = [1, 1]} : vector<32x32xf32> to vector<8x32xf32>
      %cst_42 = arith.constant dense<0.000000e+00> : vector<16x32xf32>
      %117 = tpu.matmul %115, %116, %cst_42 {dimension_numbers = #tpu.dot_dimension_numbers<[1], [0], [0], [1], [0, 0, 1, 1], [], []>} : vector<16x8xf32>, vector<8x32xf32>, vector<16x32xf32> -> vector<16x32xf32>
      %118 = arith.addf %99, %117 : vector<16x32xf32>
      %119 = vector.extract_strided_slice %39 {offsets = [0, 24], sizes = [16, 8], strides = [1, 1]} : vector<16x32xf32> to vector<16x8xf32>
      %120 = vector.extract_strided_slice %43 {offsets = [0, 24], sizes = [16, 8], strides = [1, 1]} : vector<16x32xf32> to vector<16x8xf32>
      %121 = vector.extract_strided_slice %47 {offsets = [0, 24], sizes = [16, 8], strides = [1, 1]} : vector<16x32xf32> to vector<16x8xf32>
      %cst_43 = arith.constant dense<0.000000e+00> : vector<16x16xf32>
      %122 = tpu.matmul %119, %120, %cst_43 {dimension_numbers = #tpu.dot_dimension_numbers<[1], [1], [0], [0], [0, 0, 1, 0], [], []>} : vector<16x8xf32>, vector<16x8xf32>, vector<16x16xf32> -> vector<16x16xf32>
      %123 = arith.addf %122, %58 : vector<16x16xf32>
      %cst_44 = arith.constant dense<0xFF800000> : vector<16xf32>
      %124 = vector.multi_reduction <maximumf>, %123, %cst_44 [1] : vector<16x16xf32> to vector<16xf32>
      %125 = vector.shape_cast %124 : vector<16xf32> to vector<16x1xf32>
      %126 = vector.broadcast %125 : vector<16x1xf32> to vector<16x16xf32>
      %127 = arith.subf %123, %126 : vector<16x16xf32>
      %128 = math.exp %127 : vector<16x16xf32>
      %cst_45 = arith.constant dense<0.000000e+00> : vector<16xf32>
      %129 = vector.multi_reduction <add>, %128, %cst_45 [1] : vector<16x16xf32> to vector<16xf32>
      %130 = vector.shape_cast %129 : vector<16xf32> to vector<16x1xf32>
      %131 = tpu.reciprocal %130 {approx = true} : vector<16x1xf32> -> vector<16x1xf32>
      %132 = vector.broadcast %131 : vector<16x1xf32> to vector<16x16xf32>
      %133 = arith.mulf %128, %132 : vector<16x16xf32>
      %cst_46 = arith.constant dense<0.000000e+00> : vector<16x8xf32>
      %134 = tpu.matmul %133, %121, %cst_46 {dimension_numbers = #tpu.dot_dimension_numbers<[1], [0], [0], [1], [0, 0, 1, 1], [], []>} : vector<16x16xf32>, vector<16x8xf32>, vector<16x8xf32> -> vector<16x8xf32>
      %135 = vector.extract_strided_slice %48 {offsets = [24, 0], sizes = [8, 32], strides = [1, 1]} : vector<32x32xf32> to vector<8x32xf32>
      %cst_47 = arith.constant dense<0.000000e+00> : vector<16x32xf32>
      %136 = tpu.matmul %134, %135, %cst_47 {dimension_numbers = #tpu.dot_dimension_numbers<[1], [0], [0], [1], [0, 0, 1, 1], [], []>} : vector<16x8xf32>, vector<8x32xf32>, vector<16x32xf32> -> vector<16x32xf32>
      %137 = arith.addf %118, %136 : vector<16x32xf32>
      %138 = vector.extract_strided_slice %0 {offsets = [4, 0], sizes = [1, 32], strides = [1, 1]} : vector<20x32xf32> to vector<1x32xf32>
      %139 = vector.extract_strided_slice %0 {offsets = [5, 0], sizes = [1, 32], strides = [1, 1]} : vector<20x32xf32> to vector<1x32xf32>
      %cst_48 = arith.constant dense<0.000000e+00> : vector<16xf32>
      %140 = vector.multi_reduction <add>, %137, %cst_48 [1] : vector<16x32xf32> to vector<16xf32>
      %141 = vector.shape_cast %140 : vector<16xf32> to vector<16x1xf32>
      %cst_49 = arith.constant 3.200000e+01 : f32
      %142 = vector.broadcast %cst_49 : f32 to vector<16x1xf32>
      %143 = arith.divf %141, %142 : vector<16x1xf32>
      %144 = vector.broadcast %143 : vector<16x1xf32> to vector<16x32xf32>
      %145 = arith.subf %137, %144 : vector<16x32xf32>
      %146 = arith.mulf %145, %145 : vector<16x32xf32>
      %cst_50 = arith.constant dense<0.000000e+00> : vector<16xf32>
      %147 = vector.multi_reduction <add>, %146, %cst_50 [1] : vector<16x32xf32> to vector<16xf32>
      %148 = vector.shape_cast %147 : vector<16xf32> to vector<16x1xf32>
      %cst_51 = arith.constant 3.200000e+01 : f32
      %149 = vector.broadcast %cst_51 : f32 to vector<16x1xf32>
      %150 = arith.divf %148, %149 : vector<16x1xf32>
      %151 = vector.broadcast %143 : vector<16x1xf32> to vector<16x32xf32>
      %152 = arith.subf %137, %151 : vector<16x32xf32>
      %cst_52 = arith.constant 9.99999974E-6 : f32
      %153 = vector.broadcast %cst_52 : f32 to vector<16x1xf32>
      %154 = arith.addf %150, %153 : vector<16x1xf32>
      %155 = math.rsqrt %154 : vector<16x1xf32>
      %156 = vector.broadcast %155 : vector<16x1xf32> to vector<16x32xf32>
      %157 = arith.mulf %152, %156 : vector<16x32xf32>
      %158 = vector.broadcast %138 : vector<1x32xf32> to vector<16x32xf32>
      %159 = arith.mulf %157, %158 : vector<16x32xf32>
      %160 = vector.broadcast %139 : vector<1x32xf32> to vector<16x32xf32>
      %161 = arith.addf %159, %160 : vector<16x32xf32>
      %c0_53 = arith.constant 0 : index
      %c0_54 = arith.constant 0 : index
      %162 = vector.load %arg10[%c0_53, %c0_54] : memref<16x32xf32, #tpu.memory_space<vmem>>, vector<16x32xf32>
      tpu.vector_store %arg10[%c0_53, %c0_54], %161 {strides = array<i32>} : memref<16x32xf32, #tpu.memory_space<vmem>>, vector<16x32xf32>,
      %cst_55 = arith.constant 0.000000e+00 : f32
      %163 = vector.broadcast %cst_55 : f32 to vector<16x32xf32>
      %c0_56 = arith.constant 0 : index
      %c0_57 = arith.constant 0 : index
      %164 = vector.load %arg11[%c0_56, %c0_57] : memref<16x32xf32, #tpu.memory_space<vmem>>, vector<16x32xf32>
      tpu.vector_store %arg11[%c0_56, %c0_57], %163 {strides = array<i32>} : memref<16x32xf32, #tpu.memory_space<vmem>>, vector<16x32xf32>,
    } else {
    }
    %c0_2 = arith.constant 0 : index
    %c0_3 = arith.constant 0 : index
    %4 = vector.load %arg10[%c0_2, %c0_3] : memref<16x32xf32, #tpu.memory_space<vmem>>, vector<16x32xf32>
    %5 = arith.truncf %4 : vector<16x32xf32> to vector<16x32xbf16>
    %c0_4 = arith.constant 0 : index
    %c0_5 = arith.constant 0 : index
    %6 = vector.load %arg5[%c0_4, %c0_5] : memref<32x512xbf16, #tpu.memory_space<vmem>>, vector<32x512xbf16>
    %cst = arith.constant dense<0.000000e+00> : vector<16x512xf32>
    %7 = tpu.matmul %5, %6, %cst {dimension_numbers = #tpu.dot_dimension_numbers<[1], [0], [0], [1], [0, 0, 1, 1], [], []>} : vector<16x32xbf16>, vector<32x512xbf16>, vector<16x512xf32> -> vector<16x512xf32>
    %c0_6 = arith.constant 0 : index
    %c0_7 = arith.constant 0 : index
    %8 = vector.load %arg6[%c0_6, %c0_7] : memref<1x512xf32, #tpu.memory_space<vmem>>, vector<1x512xf32>
    %9 = vector.broadcast %8 : vector<1x512xf32> to vector<16x512xf32>
    %10 = arith.addf %7, %9 : vector<16x512xf32>
    %cst_8 = arith.constant 5.000000e-01 : f32
    %11 = vector.broadcast %cst_8 : f32 to vector<16x512xf32>
    %12 = arith.mulf %11, %10 : vector<16x512xf32>
    %cst_9 = arith.constant 4.471500e-02 : f32
    %13 = vector.broadcast %cst_9 : f32 to vector<16x512xf32>
    %14 = arith.mulf %13, %10 : vector<16x512xf32>
    %15 = arith.mulf %14, %10 : vector<16x512xf32>
    %16 = arith.mulf %15, %10 : vector<16x512xf32>
    %17 = arith.addf %10, %16 : vector<16x512xf32>
    %cst_10 = arith.constant 0.797884583 : f32
    %18 = vector.broadcast %cst_10 : f32 to vector<16x512xf32>
    %19 = arith.mulf %18, %17 : vector<16x512xf32>
    %20 = math.tanh %19 : vector<16x512xf32>
    %cst_11 = arith.constant 1.000000e+00 : f32
    %21 = vector.broadcast %cst_11 : f32 to vector<16x512xf32>
    %22 = arith.addf %21, %20 : vector<16x512xf32>
    %23 = arith.mulf %12, %22 : vector<16x512xf32>
    %c0_12 = arith.constant 0 : index
    %c0_13 = arith.constant 0 : index
    %24 = vector.load %arg11[%c0_12, %c0_13] : memref<16x32xf32, #tpu.memory_space<vmem>>, vector<16x32xf32>
    %25 = arith.truncf %23 : vector<16x512xf32> to vector<16x512xbf16>
    %c0_14 = arith.constant 0 : index
    %c0_15 = arith.constant 0 : index
    %26 = vector.load %arg7[%c0_14, %c0_15] : memref<32x512xbf16, #tpu.memory_space<vmem>>, vector<32x512xbf16>
    %cst_16 = arith.constant dense<0.000000e+00> : vector<16x32xf32>
    %27 = tpu.matmul %25, %26, %cst_16 {dimension_numbers = #tpu.dot_dimension_numbers<[1], [1], [0], [0], [0, 0, 1, 0], [], []>} : vector<16x512xbf16>, vector<32x512xbf16>, vector<16x32xf32> -> vector<16x32xf32>
    %28 = arith.addf %24, %27 : vector<16x32xf32>
    %c0_17 = arith.constant 0 : index
    %c0_18 = arith.constant 0 : index
    %29 = vector.load %arg11[%c0_17, %c0_18] : memref<16x32xf32, #tpu.memory_space<vmem>>, vector<16x32xf32>
    tpu.vector_store %arg11[%c0_17, %c0_18], %28 {strides = array<i32>} : memref<16x32xf32, #tpu.memory_space<vmem>>, vector<16x32xf32>,
    %c3_i32 = arith.constant 3 : i32
    %30 = arith.cmpi eq, %arg0, %c3_i32 : i32
    %31 = arith.extui %30 : i1 to i32
    %c0_i32_19 = arith.constant 0 : i32
    %32 = arith.cmpi ne, %31, %c0_i32_19 : i32
    scf.if %32 {
      %c0_20 = arith.constant 0 : index
      %c0_21 = arith.constant 0 : index
      %33 = vector.load %arg11[%c0_20, %c0_21] : memref<16x32xf32, #tpu.memory_space<vmem>>, vector<16x32xf32>
      %34 = vector.extract_strided_slice %0 {offsets = [6, 0], sizes = [1, 32], strides = [1, 1]} : vector<20x32xf32> to vector<1x32xf32>
      %35 = vector.broadcast %34 : vector<1x32xf32> to vector<16x32xf32>
      %36 = arith.addf %33, %35 : vector<16x32xf32>
      %c0_22 = arith.constant 0 : index
      %c0_23 = arith.constant 0 : index
      %37 = vector.load %arg10[%c0_22, %c0_23] : memref<16x32xf32, #tpu.memory_space<vmem>>, vector<16x32xf32>
      %38 = arith.addf %37, %36 : vector<16x32xf32>
      %39 = vector.extract_strided_slice %0 {offsets = [7, 0], sizes = [1, 32], strides = [1, 1]} : vector<20x32xf32> to vector<1x32xf32>
      %40 = vector.extract_strided_slice %0 {offsets = [8, 0], sizes = [1, 32], strides = [1, 1]} : vector<20x32xf32> to vector<1x32xf32>
      %cst_24 = arith.constant dense<0.000000e+00> : vector<16xf32>
      %41 = vector.multi_reduction <add>, %38, %cst_24 [1] : vector<16x32xf32> to vector<16xf32>
      %42 = vector.shape_cast %41 : vector<16xf32> to vector<16x1xf32>
      %cst_25 = arith.constant 3.200000e+01 : f32
      %43 = vector.broadcast %cst_25 : f32 to vector<16x1xf32>
      %44 = arith.divf %42, %43 : vector<16x1xf32>
      %45 = vector.broadcast %44 : vector<16x1xf32> to vector<16x32xf32>
      %46 = arith.subf %38, %45 : vector<16x32xf32>
      %47 = arith.mulf %46, %46 : vector<16x32xf32>
      %cst_26 = arith.constant dense<0.000000e+00> : vector<16xf32>
      %48 = vector.multi_reduction <add>, %47, %cst_26 [1] : vector<16x32xf32> to vector<16xf32>
      %49 = vector.shape_cast %48 : vector<16xf32> to vector<16x1xf32>
      %cst_27 = arith.constant 3.200000e+01 : f32
      %50 = vector.broadcast %cst_27 : f32 to vector<16x1xf32>
      %51 = arith.divf %49, %50 : vector<16x1xf32>
      %52 = vector.broadcast %44 : vector<16x1xf32> to vector<16x32xf32>
      %53 = arith.subf %38, %52 : vector<16x32xf32>
      %cst_28 = arith.constant 9.99999974E-6 : f32
      %54 = vector.broadcast %cst_28 : f32 to vector<16x1xf32>
      %55 = arith.addf %51, %54 : vector<16x1xf32>
      %56 = math.rsqrt %55 : vector<16x1xf32>
      %57 = vector.broadcast %56 : vector<16x1xf32> to vector<16x32xf32>
      %58 = arith.mulf %53, %57 : vector<16x32xf32>
      %59 = vector.broadcast %39 : vector<1x32xf32> to vector<16x32xf32>
      %60 = arith.mulf %58, %59 : vector<16x32xf32>
      %61 = vector.broadcast %40 : vector<1x32xf32> to vector<16x32xf32>
      %62 = arith.addf %60, %61 : vector<16x32xf32>
      %c0_29 = arith.constant 0 : index
      %c0_30 = arith.constant 0 : index
      %63 = vector.load %arg3[%c0_29, %c0_30] : memref<32x32xf32, #tpu.memory_space<vmem>>, vector<32x32xf32>
      %64 = vector.extract_strided_slice %63 {offsets = [0, 0], sizes = [32, 16], strides = [1, 1]} : vector<32x32xf32> to vector<32x16xf32>
      %cst_31 = arith.constant dense<0.000000e+00> : vector<16x16xf32>
      %65 = tpu.matmul %62, %64, %cst_31 {dimension_numbers = #tpu.dot_dimension_numbers<[1], [0], [0], [1], [0, 0, 1, 1], [], []>} : vector<16x32xf32>, vector<32x16xf32>, vector<16x16xf32> -> vector<16x16xf32>
      %66 = vector.extract_strided_slice %0 {offsets = [9, 0], sizes = [1, 16], strides = [1, 1]} : vector<20x32xf32> to vector<1x16xf32>
      %67 = vector.broadcast %66 : vector<1x16xf32> to vector<16x16xf32>
      %68 = arith.addf %65, %67 : vector<16x16xf32>
      %cst_32 = arith.constant 5.000000e-01 : f32
      %69 = vector.broadcast %cst_32 : f32 to vector<16x16xf32>
      %70 = arith.mulf %69, %68 : vector<16x16xf32>
      %cst_33 = arith.constant 4.471500e-02 : f32
      %71 = vector.broadcast %cst_33 : f32 to vector<16x16xf32>
      %72 = arith.mulf %71, %68 : vector<16x16xf32>
      %73 = arith.mulf %72, %68 : vector<16x16xf32>
      %74 = arith.mulf %73, %68 : vector<16x16xf32>
      %75 = arith.addf %68, %74 : vector<16x16xf32>
      %cst_34 = arith.constant 0.797884583 : f32
      %76 = vector.broadcast %cst_34 : f32 to vector<16x16xf32>
      %77 = arith.mulf %76, %75 : vector<16x16xf32>
      %78 = math.tanh %77 : vector<16x16xf32>
      %cst_35 = arith.constant 1.000000e+00 : f32
      %79 = vector.broadcast %cst_35 : f32 to vector<16x16xf32>
      %80 = arith.addf %79, %78 : vector<16x16xf32>
      %81 = arith.mulf %70, %80 : vector<16x16xf32>
      %82 = vector.extract_strided_slice %0 {offsets = [10, 0], sizes = [1, 16], strides = [1, 1]} : vector<20x32xf32> to vector<1x16xf32>
      %83 = vector.broadcast %82 : vector<1x16xf32> to vector<16x16xf32>
      %84 = arith.mulf %81, %83 : vector<16x16xf32>
      %cst_36 = arith.constant dense<0.000000e+00> : vector<16xf32>
      %85 = vector.multi_reduction <add>, %84, %cst_36 [1] : vector<16x16xf32> to vector<16xf32>
      %86 = vector.shape_cast %85 : vector<16xf32> to vector<16x1xf32>
      %87 = vector.extract_strided_slice %0 {offsets = [19, 0], sizes = [1, 1], strides = [1, 1]} : vector<20x32xf32> to vector<1x1xf32>
      %88 = vector.broadcast %87 : vector<1x1xf32> to vector<16x1xf32>
      %89 = arith.addf %86, %88 : vector<16x1xf32>
      %90 = arith.negf %89 : vector<16x1xf32>
      %91 = math.exp %90 : vector<16x1xf32>
      %cst_37 = arith.constant 1.000000e+00 : f32
      %92 = vector.broadcast %cst_37 : f32 to vector<16x1xf32>
      %93 = arith.addf %92, %91 : vector<16x1xf32>
      %94 = arith.divf %92, %93 : vector<16x1xf32>
      %95 = vector.broadcast %94 : vector<16x1xf32> to vector<16x32xf32>
      %96 = arith.mulf %62, %95 : vector<16x32xf32>
      %97 = vector.extract_strided_slice %63 {offsets = [0, 16], sizes = [32, 16], strides = [1, 1]} : vector<32x32xf32> to vector<32x16xf32>
      %cst_38 = arith.constant dense<0.000000e+00> : vector<16x16xf32>
      %98 = tpu.matmul %96, %97, %cst_38 {dimension_numbers = #tpu.dot_dimension_numbers<[1], [0], [0], [1], [0, 0, 1, 1], [], []>} : vector<16x32xf32>, vector<32x16xf32>, vector<16x16xf32> -> vector<16x16xf32>
      %99 = vector.extract_strided_slice %0 {offsets = [11, 0], sizes = [1, 16], strides = [1, 1]} : vector<20x32xf32> to vector<1x16xf32>
      %100 = vector.broadcast %99 : vector<1x16xf32> to vector<16x16xf32>
      %101 = arith.addf %98, %100 : vector<16x16xf32>
      %cst_39 = arith.constant 5.000000e-01 : f32
      %102 = vector.broadcast %cst_39 : f32 to vector<16x16xf32>
      %103 = arith.mulf %102, %101 : vector<16x16xf32>
      %cst_40 = arith.constant 4.471500e-02 : f32
      %104 = vector.broadcast %cst_40 : f32 to vector<16x16xf32>
      %105 = arith.mulf %104, %101 : vector<16x16xf32>
      %106 = arith.mulf %105, %101 : vector<16x16xf32>
      %107 = arith.mulf %106, %101 : vector<16x16xf32>
      %108 = arith.addf %101, %107 : vector<16x16xf32>
      %cst_41 = arith.constant 0.797884583 : f32
      %109 = vector.broadcast %cst_41 : f32 to vector<16x16xf32>
      %110 = arith.mulf %109, %108 : vector<16x16xf32>
      %111 = math.tanh %110 : vector<16x16xf32>
      %cst_42 = arith.constant 1.000000e+00 : f32
      %112 = vector.broadcast %cst_42 : f32 to vector<16x16xf32>
      %113 = arith.addf %112, %111 : vector<16x16xf32>
      %114 = arith.mulf %103, %113 : vector<16x16xf32>
      %115 = vector.extract_strided_slice %0 {offsets = [12, 0], sizes = [1, 16], strides = [1, 1]} : vector<20x32xf32> to vector<1x16xf32>
      %116 = vector.broadcast %115 : vector<1x16xf32> to vector<16x16xf32>
      %117 = arith.mulf %114, %116 : vector<16x16xf32>
      %cst_43 = arith.constant dense<0.000000e+00> : vector<16xf32>
      %118 = vector.multi_reduction <add>, %117, %cst_43 [1] : vector<16x16xf32> to vector<16xf32>
      %119 = vector.shape_cast %118 : vector<16xf32> to vector<16x1xf32>
      %120 = vector.extract_strided_slice %0 {offsets = [19, 1], sizes = [1, 1], strides = [1, 1]} : vector<20x32xf32> to vector<1x1xf32>
      %121 = vector.broadcast %120 : vector<1x1xf32> to vector<16x1xf32>
      %122 = arith.addf %119, %121 : vector<16x1xf32>
      %123 = vector.extract_strided_slice %0 {offsets = [13, 0], sizes = [1, 16], strides = [1, 1]} : vector<20x32xf32> to vector<1x16xf32>
      %124 = vector.broadcast %123 : vector<1x16xf32> to vector<16x16xf32>
      %125 = arith.mulf %114, %124 : vector<16x16xf32>
      %cst_44 = arith.constant dense<0.000000e+00> : vector<16xf32>
      %126 = vector.multi_reduction <add>, %125, %cst_44 [1] : vector<16x16xf32> to vector<16xf32>
      %127 = vector.shape_cast %126 : vector<16xf32> to vector<16x1xf32>
      %128 = vector.extract_strided_slice %0 {offsets = [19, 2], sizes = [1, 1], strides = [1, 1]} : vector<20x32xf32> to vector<1x1xf32>
      %129 = vector.broadcast %128 : vector<1x1xf32> to vector<16x1xf32>
      %130 = arith.addf %127, %129 : vector<16x1xf32>
      %131 = arith.maximumf %122, %130 : vector<16x1xf32>
      %132 = arith.subf %122, %131 : vector<16x1xf32>
      %133 = math.exp %132 : vector<16x1xf32>
      %134 = arith.subf %130, %131 : vector<16x1xf32>
      %135 = math.exp %134 : vector<16x1xf32>
      %136 = arith.addf %133, %135 : vector<16x1xf32>
      %137 = tpu.reciprocal %136 {approx = true} : vector<16x1xf32> -> vector<16x1xf32>
      %cst_45 = arith.constant 1.500000e+00 : f32
      %138 = vector.broadcast %cst_45 : f32 to vector<16x1xf32>
      %139 = arith.mulf %138, %133 : vector<16x1xf32>
      %cst_46 = arith.constant 5.000000e-01 : f32
      %140 = vector.broadcast %cst_46 : f32 to vector<16x1xf32>
      %141 = arith.mulf %140, %135 : vector<16x1xf32>
      %142 = arith.addf %139, %141 : vector<16x1xf32>
      %143 = arith.mulf %142, %137 : vector<16x1xf32>
      %144 = vector.broadcast %143 : vector<16x1xf32> to vector<16x32xf32>
      %145 = arith.mulf %96, %144 : vector<16x32xf32>
      %c0_47 = arith.constant 0 : index
      %c0_48 = arith.constant 0 : index
      %146 = vector.load %arg4[%c0_47, %c0_48] : memref<64x32xf32, #tpu.memory_space<vmem>>, vector<64x32xf32>
      %147 = vector.extract_strided_slice %146 {offsets = [0, 0], sizes = [32, 32], strides = [1, 1]} : vector<64x32xf32> to vector<32x32xf32>
      %cst_49 = arith.constant dense<0.000000e+00> : vector<16x32xf32>
      %148 = tpu.matmul %145, %147, %cst_49 {dimension_numbers = #tpu.dot_dimension_numbers<[1], [0], [0], [1], [0, 0, 1, 1], [], []>} : vector<16x32xf32>, vector<32x32xf32>, vector<16x32xf32> -> vector<16x32xf32>
      %149 = vector.extract_strided_slice %146 {offsets = [32, 0], sizes = [32, 32], strides = [1, 1]} : vector<64x32xf32> to vector<32x32xf32>
      %cst_50 = arith.constant dense<0.000000e+00> : vector<16x32xf32>
      %150 = tpu.matmul %96, %149, %cst_50 {dimension_numbers = #tpu.dot_dimension_numbers<[1], [0], [0], [1], [0, 0, 1, 1], [], []>} : vector<16x32xf32>, vector<32x32xf32>, vector<16x32xf32> -> vector<16x32xf32>
      %151 = arith.addf %148, %150 : vector<16x32xf32>
      %152 = vector.extract_strided_slice %0 {offsets = [14, 0], sizes = [1, 32], strides = [1, 1]} : vector<20x32xf32> to vector<1x32xf32>
      %153 = vector.broadcast %152 : vector<1x32xf32> to vector<16x32xf32>
      %154 = arith.addf %151, %153 : vector<16x32xf32>
      %cst_51 = arith.constant 5.000000e-01 : f32
      %155 = vector.broadcast %cst_51 : f32 to vector<16x32xf32>
      %156 = arith.mulf %155, %154 : vector<16x32xf32>
      %cst_52 = arith.constant 4.471500e-02 : f32
      %157 = vector.broadcast %cst_52 : f32 to vector<16x32xf32>
      %158 = arith.mulf %157, %154 : vector<16x32xf32>
      %159 = arith.mulf %158, %154 : vector<16x32xf32>
      %160 = arith.mulf %159, %154 : vector<16x32xf32>
      %161 = arith.addf %154, %160 : vector<16x32xf32>
      %cst_53 = arith.constant 0.797884583 : f32
      %162 = vector.broadcast %cst_53 : f32 to vector<16x32xf32>
      %163 = arith.mulf %162, %161 : vector<16x32xf32>
      %164 = math.tanh %163 : vector<16x32xf32>
      %cst_54 = arith.constant 1.000000e+00 : f32
      %165 = vector.broadcast %cst_54 : f32 to vector<16x32xf32>
      %166 = arith.addf %165, %164 : vector<16x32xf32>
      %167 = arith.mulf %156, %166 : vector<16x32xf32>
      %168 = vector.extract_strided_slice %0 {offsets = [15, 0], sizes = [1, 32], strides = [1, 1]} : vector<20x32xf32> to vector<1x32xf32>
      %169 = vector.extract_strided_slice %0 {offsets = [16, 0], sizes = [1, 32], strides = [1, 1]} : vector<20x32xf32> to vector<1x32xf32>
      %cst_55 = arith.constant dense<0.000000e+00> : vector<16xf32>
      %170 = vector.multi_reduction <add>, %167, %cst_55 [1] : vector<16x32xf32> to vector<16xf32>
      %171 = vector.shape_cast %170 : vector<16xf32> to vector<16x1xf32>
      %cst_56 = arith.constant 3.200000e+01 : f32
      %172 = vector.broadcast %cst_56 : f32 to vector<16x1xf32>
      %173 = arith.divf %171, %172 : vector<16x1xf32>
      %174 = vector.broadcast %173 : vector<16x1xf32> to vector<16x32xf32>
      %175 = arith.subf %167, %174 : vector<16x32xf32>
      %176 = arith.mulf %175, %175 : vector<16x32xf32>
      %cst_57 = arith.constant dense<0.000000e+00> : vector<16xf32>
      %177 = vector.multi_reduction <add>, %176, %cst_57 [1] : vector<16x32xf32> to vector<16xf32>
      %178 = vector.shape_cast %177 : vector<16xf32> to vector<16x1xf32>
      %cst_58 = arith.constant 3.200000e+01 : f32
      %179 = vector.broadcast %cst_58 : f32 to vector<16x1xf32>
      %180 = arith.divf %178, %179 : vector<16x1xf32>
      %181 = vector.broadcast %173 : vector<16x1xf32> to vector<16x32xf32>
      %182 = arith.subf %167, %181 : vector<16x32xf32>
      %cst_59 = arith.constant 9.99999974E-6 : f32
      %183 = vector.broadcast %cst_59 : f32 to vector<16x1xf32>
      %184 = arith.addf %180, %183 : vector<16x1xf32>
      %185 = math.rsqrt %184 : vector<16x1xf32>
      %186 = vector.broadcast %185 : vector<16x1xf32> to vector<16x32xf32>
      %187 = arith.mulf %182, %186 : vector<16x32xf32>
      %188 = vector.broadcast %168 : vector<1x32xf32> to vector<16x32xf32>
      %189 = arith.mulf %187, %188 : vector<16x32xf32>
      %190 = vector.broadcast %169 : vector<1x32xf32> to vector<16x32xf32>
      %191 = arith.addf %189, %190 : vector<16x32xf32>
      %192 = vector.extract_strided_slice %0 {offsets = [17, 0], sizes = [1, 32], strides = [1, 1]} : vector<20x32xf32> to vector<1x32xf32>
      %193 = vector.extract_strided_slice %0 {offsets = [18, 0], sizes = [1, 32], strides = [1, 1]} : vector<20x32xf32> to vector<1x32xf32>
      %cst_60 = arith.constant dense<0.000000e+00> : vector<16xf32>
      %194 = vector.multi_reduction <add>, %191, %cst_60 [1] : vector<16x32xf32> to vector<16xf32>
      %195 = vector.shape_cast %194 : vector<16xf32> to vector<16x1xf32>
      %cst_61 = arith.constant 3.200000e+01 : f32
      %196 = vector.broadcast %cst_61 : f32 to vector<16x1xf32>
      %197 = arith.divf %195, %196 : vector<16x1xf32>
      %198 = vector.broadcast %197 : vector<16x1xf32> to vector<16x32xf32>
      %199 = arith.subf %191, %198 : vector<16x32xf32>
      %200 = arith.mulf %199, %199 : vector<16x32xf32>
      %cst_62 = arith.constant dense<0.000000e+00> : vector<16xf32>
      %201 = vector.multi_reduction <add>, %200, %cst_62 [1] : vector<16x32xf32> to vector<16xf32>
      %202 = vector.shape_cast %201 : vector<16xf32> to vector<16x1xf32>
      %cst_63 = arith.constant 3.200000e+01 : f32
      %203 = vector.broadcast %cst_63 : f32 to vector<16x1xf32>
      %204 = arith.divf %202, %203 : vector<16x1xf32>
      %205 = vector.broadcast %197 : vector<16x1xf32> to vector<16x32xf32>
      %206 = arith.subf %191, %205 : vector<16x32xf32>
      %cst_64 = arith.constant 9.99999974E-6 : f32
      %207 = vector.broadcast %cst_64 : f32 to vector<16x1xf32>
      %208 = arith.addf %204, %207 : vector<16x1xf32>
      %209 = math.rsqrt %208 : vector<16x1xf32>
      %210 = vector.broadcast %209 : vector<16x1xf32> to vector<16x32xf32>
      %211 = arith.mulf %206, %210 : vector<16x32xf32>
      %212 = vector.broadcast %192 : vector<1x32xf32> to vector<16x32xf32>
      %213 = arith.mulf %211, %212 : vector<16x32xf32>
      %214 = vector.broadcast %193 : vector<1x32xf32> to vector<16x32xf32>
      %215 = arith.addf %213, %214 : vector<16x32xf32>
      %c0_65 = arith.constant 0 : index
      %c0_66 = arith.constant 0 : index
      %216 = vector.load %arg9[%c0_65, %c0_66] : memref<16x32xf32, #tpu.memory_space<vmem>>, vector<16x32xf32>
      tpu.vector_store %arg9[%c0_65, %c0_66], %215 {strides = array<i32>} : memref<16x32xf32, #tpu.memory_space<vmem>>, vector<16x32xf32>,
    } else {
    }
    return
  }
  func.func @transform_0(%arg0: i32) -> (i32, i32) {
    %c0_i32 = arith.constant 0 : i32
    %c0_i32_0 = arith.constant 0 : i32
    %c0_i32_1 = arith.constant 0 : i32
    return %c0_i32, %c0_i32_0 : i32, i32
  }
  func.func @transform_1(%arg0: i32) -> (i32, i32) {
    %c0_i32 = arith.constant 0 : i32
    %c0_i32_0 = arith.constant 0 : i32
    %c0_i32_1 = arith.constant 0 : i32
    return %c0_i32, %c0_i32_0 : i32, i32
  }
  func.func @transform_2(%arg0: i32) -> (i32, i32) {
    %c0_i32 = arith.constant 0 : i32
    %c0_i32_0 = arith.constant 0 : i32
    %c0_i32_1 = arith.constant 0 : i32
    return %c0_i32, %c0_i32_0 : i32, i32
  }
  func.func @transform_3(%arg0: i32) -> (i32, i32) {
    %c0_i32 = arith.constant 0 : i32
    %c0_i32_0 = arith.constant 0 : i32
    %c0_i32_1 = arith.constant 0 : i32
    return %c0_i32, %c0_i32_0 : i32, i32
  }
  func.func @transform_4(%arg0: i32) -> (i32, i32) {
    %c0_i32 = arith.constant 0 : i32
    %c0_i32_0 = arith.constant 0 : i32
    return %c0_i32, %arg0 : i32, i32
  }
  func.func @transform_5(%arg0: i32) -> (i32, i32) {
    %c0_i32 = arith.constant 0 : i32
    %c0_i32_0 = arith.constant 0 : i32
    return %c0_i32, %arg0 : i32, i32
  }
  func.func @transform_6(%arg0: i32) -> (i32, i32) {
    %c0_i32 = arith.constant 0 : i32
    %c0_i32_0 = arith.constant 0 : i32
    return %c0_i32, %arg0 : i32, i32
  }
  func.func @transform_7(%arg0: i32) -> (i32, i32) {
    %c0_i32 = arith.constant 0 : i32
    %c0_i32_0 = arith.constant 0 : i32
    %c0_i32_1 = arith.constant 0 : i32
    return %c0_i32, %c0_i32_0 : i32, i32
  }
  func.func @transform_8(%arg0: i32) -> (i32, i32) {
    %c0_i32 = arith.constant 0 : i32
    %c0_i32_0 = arith.constant 0 : i32
    %c0_i32_1 = arith.constant 0 : i32
    return %c0_i32, %c0_i32_0 : i32, i32
  }
}

</mosaic_0001>

<llo_original>
// kernel: tpu_custom_call.1
$region0: #{tpu_custom_call.1}
  #allocation0 [shape = 'u32[]', space=smem, size = 0x4, offset = 0x4, fixed_abs, tag = 'smem constant byte address 0x4 - core index']
  #allocation1 [shape = 'u32[72,128]{1,0:T(1,128)}', space=vmem, size = 0x9000, scoped, tag = 'internal scratch']
  #allocation2 [shape = 'f32[16,32]{1,0:T(8,128)}', space=vmem, size = 0x2000, scoped, tag = 'scratch operand']
  #allocation3 [shape = 'f32[16,32]{1,0:T(8,128)}', space=vmem, size = 0x2000, scoped, tag = 'scratch operand']
  %s0 = inlined_call_operand.hbm [shape: f32[16,32], index: 0, kind: input, shape index: {}]
  %s1 = inlined_call_operand.vmem [shape: f32[32,128], index: 1, kind: input, shape index: {}]
  %s2 = inlined_call_operand.vmem [shape: f32[32,32], index: 2, kind: input, shape index: {}]
  %s3 = inlined_call_operand.vmem [shape: f32[64,32], index: 3, kind: input, shape index: {}]
  %s4 = inlined_call_operand.hbm [shape: bf16[32,2048], index: 4, kind: input, shape index: {}]
  %s5 = inlined_call_operand.hbm [shape: f32[1,2048], index: 5, kind: input, shape index: {}]
  %s6 = inlined_call_operand.hbm [shape: bf16[32,2048], index: 6, kind: input, shape index: {}]
  %s7 = inlined_call_operand.vmem [shape: f32[20,32], index: 7, kind: input, shape index: {}]
  %s8 = inlined_call_operand.hbm [shape: f32[16,32], index: 8, kind: output, shape index: {}]
  %s9 = sld [smem:[#allocation0]]
  $region89: #{tpu_custom_call.1} parent=0
    _
  %s11 = ssub.s32 1, %s9
  %s12 = scalar_select 0, %s11, %s9
  $region1: #{tpu_custom_call.1} parent=0
    #allocation4 [shape = 'u8[8192]{0}', space=vmem, size = 0x2000, scoped, tag = 'input window, operand 0, single buffered']
    #allocation5 [shape = 's32[2]{0}', space=sflag, size = 0x8, scoped, tag = 'scoped memory for tpu_custom_call.1']
    #allocation6 [shape = 's32[2]{0}', space=sflag, size = 0x8, scoped, tag = 'scoped memory for tpu_custom_call.1']
    #allocation7 [shape = 'u8[65536]{0}', space=vmem, size = 0x10000, scoped, tag = 'input window, operand 4']
    #allocation8 [shape = 's32[2]{0}', space=sflag, size = 0x8, scoped, tag = 'scoped memory for tpu_custom_call.1']
    #allocation9 [shape = 'u8[4096]{0}', space=vmem, size = 0x1000, scoped, tag = 'input window, operand 5']
    #allocation10 [shape = 'u8[65536]{0}', space=vmem, size = 0x10000, scoped, tag = 'input window, operand 6']
    #allocation11 [shape = 's32[2]{0}', space=sflag, size = 0x8, scoped, tag = 'scoped memory for tpu_custom_call.1']
    #allocation12 [shape = 'u8[8192]{0}', space=vmem, size = 0x2000, scoped, tag = 'output window, operand 0, single buffered']
    %13 = vsyncpa [#allocation5], 0
    %14 = vsyncpa [#allocation8], 0
    %s15 = scalar_lea.sflag [#allocation8], 1
    %16 = vsyncpa %s15, 0
    %17 = vsyncpa [#allocation11], 0
    %s18 = scalar_lea.sflag [#allocation11], 1
    %19 = vsyncpa %s18, 0
    %20 = vsyncpa [#allocation6], 0
    loop: start=0, step=1, limit=6
    $region2: #{tpu_custom_call.1} parent=1 // loop_pre_header
      _
    $region3: #{tpu_custom_call.1} parent=1 // loop_header
      %s22 = sphi 0, %s26
      %p23 = scmp.ge.s32.totalorder %s22, 6
      %s30 = sphi 0, %s30
      %s32 = sphi 0, %s30
      %s33 = sphi 0, %s32
      %s47 = sphi 0, %s33
      %s51 = sphi 0, %s51
      %s53 = sphi 0, %s51
      %s54 = sphi 0, %s53
      %s68 = sphi 0, %s54
      %s72 = sphi 0, %s72
      %s74 = sphi 0, %s72
      %s75 = sphi 0, %s74
      %s89 = sphi 0, %s75
      %s93 = sphi 0, %s93
      %s95 = sphi 0, %s93
      %s96 = sphi 0, %s95
      %s110 = sphi 0, %s96
      %s116 = sphi 0, %s118
      %s119 = sphi 0, %s116
      %s120 = sphi 0, %s119
      %s136 = sphi 0, %s120
      %s142 = sphi 0, %s144
      %s145 = sphi 0, %s142
      %s146 = sphi 0, %s145
      %s162 = sphi 0, %s146
      %s168 = sphi 0, %s170
      %s171 = sphi 0, %s168
      %s172 = sphi 0, %s171
      %s188 = sphi 0, %s172
      %s192 = sphi 0, %s192
      %s194 = sphi 0, %s192
      %s195 = sphi 0, %s194
      %s209 = sphi 0, %s195
      %s213 = sphi 0, %s213
      %s215 = sphi 0, %s213
      %s216 = sphi 0, %s215
      %s230 = sphi 0, %s216
    $region4: #{tpu_custom_call.1} parent=1 // loop_header_branch
      %25 = sbr.rel (%p23) target = $region8
    $region5: #{tpu_custom_call.1} parent=1 // loop_body
      %s27 = ssub.s32 %s22, 1
      %s28 = ssub.s32 %s22, 2
      %s29 = sadd.s32 %s22, 1
      %s31 = sadd.s32 %s30, 1
      %p34 = scmp.eq.s32.totalorder %s22, 3
      %p35 = scmp.ne.s32.totalorder %s30, %s32
      %p36 = scmp.eq.s32.totalorder %s22, 0
      %p37 = por %p35, %p36
      %p38 = scmp.ne.s32.totalorder %s30, %s32
      %p39 = scmp.eq.s32.totalorder %s27, 3
      %p40 = por %p38, %p39
      %p41 = scmp.ne.s32.totalorder %s32, %s33
      %p42 = scmp.eq.s32.totalorder %s27, 0
      %p43 = por %p41, %p42
      %p44 = scmp.ne.s32.totalorder %s32, %s33
      %p45 = scmp.eq.s32.totalorder %s28, 3
      %p46 = por %p44, %p45
      %p48 = scmp.ne.s32.totalorder %s33, %s47
      %p49 = scmp.eq.s32.totalorder %s28, 0
      %p50 = por %p48, %p49
      %s52 = sadd.s32 %s51, 1
      %p55 = scmp.eq.s32.totalorder %s22, 3
      %p56 = scmp.ne.s32.totalorder %s51, %s53
      %p57 = scmp.eq.s32.totalorder %s22, 0
      %p58 = por %p56, %p57
      %p59 = scmp.ne.s32.totalorder %s51, %s53
      %p60 = scmp.eq.s32.totalorder %s27, 3
      %p61 = por %p59, %p60
      %p62 = scmp.ne.s32.totalorder %s53, %s54
      %p63 = scmp.eq.s32.totalorder %s27, 0
      %p64 = por %p62, %p63
      %p65 = scmp.ne.s32.totalorder %s53, %s54
      %p66 = scmp.eq.s32.totalorder %s28, 3
      %p67 = por %p65, %p66
      %p69 = scmp.ne.s32.totalorder %s54, %s68
      %p70 = scmp.eq.s32.totalorder %s28, 0
      %p71 = por %p69, %p70
      %s73 = sadd.s32 %s72, 1
      %p76 = scmp.eq.s32.totalorder %s22, 3
      %p77 = scmp.ne.s32.totalorder %s72, %s74
      %p78 = scmp.eq.s32.totalorder %s22, 0
      %p79 = por %p77, %p78
      %p80 = scmp.ne.s32.totalorder %s72, %s74
      %p81 = scmp.eq.s32.totalorder %s27, 3
      %p82 = por %p80, %p81
      %p83 = scmp.ne.s32.totalorder %s74, %s75
      %p84 = scmp.eq.s32.totalorder %s27, 0
      %p85 = por %p83, %p84
      %p86 = scmp.ne.s32.totalorder %s74, %s75
      %p87 = scmp.eq.s32.totalorder %s28, 3
      %p88 = por %p86, %p87
      %p90 = scmp.ne.s32.totalorder %s75, %s89
      %p91 = scmp.eq.s32.totalorder %s28, 0
      %p92 = por %p90, %p91
      %s94 = sadd.s32 %s93, 1
      %p97 = scmp.eq.s32.totalorder %s22, 3
      %p98 = scmp.ne.s32.totalorder %s93, %s95
      %p99 = scmp.eq.s32.totalorder %s22, 0
      %p100 = por %p98, %p99
      %p101 = scmp.ne.s32.totalorder %s93, %s95
      %p102 = scmp.eq.s32.totalorder %s27, 3
      %p103 = por %p101, %p102
      %p104 = scmp.ne.s32.totalorder %s95, %s96
      %p105 = scmp.eq.s32.totalorder %s27, 0
      %p106 = por %p104, %p105
      %p107 = scmp.ne.s32.totalorder %s95, %s96
      %p108 = scmp.eq.s32.totalorder %s28, 3
      %p109 = por %p107, %p108
      %p111 = scmp.ne.s32.totalorder %s96, %s110
      %p112 = scmp.eq.s32.totalorder %s28, 0
      %p113 = por %p111, %p112
      %s114 = ssub.s32 %s22, %s29
      %p115 = scmp.eq.s32.totalorder %s114, 0
      %s117 = sadd.s32 %s116, 1
      %s118 = scalar_select %p115, %s116, %s117
      %p121 = pneg %p115
      %p122 = scmp.eq.s32.totalorder %s22, 3
      %p123 = por %p121, %p122
      %p124 = scmp.ne.s32.totalorder %s116, %s119
      %p125 = scmp.eq.s32.totalorder %s22, 0
      %p126 = por %p124, %p125
      %p127 = scmp.ne.s32.totalorder %s116, %s119
      %p128 = scmp.eq.s32.totalorder %s27, 3
      %p129 = por %p127, %p128
      %p130 = scmp.ne.s32.totalorder %s119, %s120
      %p131 = scmp.eq.s32.totalorder %s27, 0
      %p132 = por %p130, %p131
      %p133 = scmp.ne.s32.totalorder %s119, %s120
      %p134 = scmp.eq.s32.totalorder %s28, 3
      %p135 = por %p133, %p134
      %p137 = scmp.ne.s32.totalorder %s120, %s136
      %p138 = scmp.eq.s32.totalorder %s28, 0
      %p139 = por %p137, %p138
      %s140 = ssub.s32 %s22, %s29
      %p141 = scmp.eq.s32.totalorder %s140, 0
      %s143 = sadd.s32 %s142, 1
      %s144 = scalar_select %p141, %s142, %s143
      %p147 = pneg %p141
      %p148 = scmp.eq.s32.totalorder %s22, 3
      %p149 = por %p147, %p148
      %p150 = scmp.ne.s32.totalorder %s142, %s145
      %p151 = scmp.eq.s32.totalorder %s22, 0
      %p152 = por %p150, %p151
      %p153 = scmp.ne.s32.totalorder %s142, %s145
      %p154 = scmp.eq.s32.totalorder %s27, 3
      %p155 = por %p153, %p154
      %p156 = scmp.ne.s32.totalorder %s145, %s146
      %p157 = scmp.eq.s32.totalorder %s27, 0
      %p158 = por %p156, %p157
      %p159 = scmp.ne.s32.totalorder %s145, %s146
      %p160 = scmp.eq.s32.totalorder %s28, 3
      %p161 = por %p159, %p160
      %p163 = scmp.ne.s32.totalorder %s146, %s162
      %p164 = scmp.eq.s32.totalorder %s28, 0
      %p165 = por %p163, %p164
      %s166 = ssub.s32 %s22, %s29
      %p167 = scmp.eq.s32.totalorder %s166, 0
      %s169 = sadd.s32 %s168, 1
      %s170 = scalar_select %p167, %s168, %s169
      %p173 = pneg %p167
      %p174 = scmp.eq.s32.totalorder %s22, 3
      %p175 = por %p173, %p174
      %p176 = scmp.ne.s32.totalorder %s168, %s171
      %p177 = scmp.eq.s32.totalorder %s22, 0
      %p178 = por %p176, %p177
      %p179 = scmp.ne.s32.totalorder %s168, %s171
      %p180 = scmp.eq.s32.totalorder %s27, 3
      %p181 = por %p179, %p180
      %p182 = scmp.ne.s32.totalorder %s171, %s172
      %p183 = scmp.eq.s32.totalorder %s27, 0
      %p184 = por %p182, %p183
      %p185 = scmp.ne.s32.totalorder %s171, %s172
      %p186 = scmp.eq.s32.totalorder %s28, 3
      %p187 = por %p185, %p186
      %p189 = scmp.ne.s32.totalorder %s172, %s188
      %p190 = scmp.eq.s32.totalorder %s28, 0
      %p191 = por %p189, %p190
      %s193 = sadd.s32 %s192, 1
      %p196 = scmp.eq.s32.totalorder %s22, 3
      %p197 = scmp.ne.s32.totalorder %s192, %s194
      %p198 = scmp.eq.s32.totalorder %s22, 0
      %p199 = por %p197, %p198
      %p200 = scmp.ne.s32.totalorder %s192, %s194
      %p201 = scmp.eq.s32.totalorder %s27, 3
      %p202 = por %p200, %p201
      %p203 = scmp.ne.s32.totalorder %s194, %s195
      %p204 = scmp.eq.s32.totalorder %s27, 0
      %p205 = por %p203, %p204
      %p206 = scmp.ne.s32.totalorder %s194, %s195
      %p207 = scmp.eq.s32.totalorder %s28, 3
      %p208 = por %p206, %p207
      %p210 = scmp.ne.s32.totalorder %s195, %s209
      %p211 = scmp.eq.s32.totalorder %s28, 0
      %p212 = por %p210, %p211
      %s214 = sadd.s32 %s213, 1
      %p217 = scmp.eq.s32.totalorder %s22, 3
      %p218 = scmp.ne.s32.totalorder %s213, %s215
      %p219 = scmp.eq.s32.totalorder %s22, 0
      %p220 = por %p218, %p219
      %p221 = scmp.ne.s32.totalorder %s213, %s215
      %p222 = scmp.eq.s32.totalorder %s27, 3
      %p223 = por %p221, %p222
      %p224 = scmp.ne.s32.totalorder %s215, %s216
      %p225 = scmp.eq.s32.totalorder %s27, 0
      %p226 = por %p224, %p225
      %p227 = scmp.ne.s32.totalorder %s215, %s216
      %p228 = scmp.eq.s32.totalorder %s28, 3
      %p229 = por %p227, %p228
      %p231 = scmp.ne.s32.totalorder %s216, %s230
      %p232 = scmp.eq.s32.totalorder %s28, 0
      %p233 = por %p231, %p232
      %p234 = scmp.le.s32.totalorder 1, %s22
      %p235 = scmp.lt.s32.totalorder %s22, 5
      %p236 = pnand %p234, %p235
      %p237 = pneg %p236
      // Predicated region
      $region9: #{tpu_custom_call.1} parent=5 // pred_check
        _
      $region10: #{tpu_custom_call.1} parent=5 // pred_check_branch
        %239 = sbr.rel (%p236) target = $region12
      $region11: #{tpu_custom_call.1} parent=5 // pred_region
        %s240 = ssub.s32 %s22, 1
        // Predicated region
        $region13: #{tpu_custom_call.1} parent=11 // pred_check
          %p241 = pneg %p43
        $region14: #{tpu_custom_call.1} parent=11 // pred_check_branch
          %243 = sbr.rel (%p241) target = $region16
        $region15: #{tpu_custom_call.1} parent=11 // pred_region
          %245 = vsyncadd [#allocation5], 0
          %s246 = sshll.u32 %s0, 4
          %s247 = int_to_ptr.hbm [resolvable:$true] %s246
          %s248 = sshll.u32 [#allocation4], 4
          %s249 = int_to_ptr.vmem [resolvable:$true] %s248
          %254 = dma.hbm_to_vmem [thread:$0]  %s247, 256, %s249, [#allocation5], 128, 128, 8
        $region16: #{tpu_custom_call.1} parent=11 // pred_fallthru
          _
        // Predicated region
        $region17: #{tpu_custom_call.1} parent=11 // pred_check
          %p255 = pneg %p64
        $region18: #{tpu_custom_call.1} parent=11 // pred_check_branch
          %257 = sbr.rel (%p255) target = $region20
        $region19: #{tpu_custom_call.1} parent=11 // pred_region
          _
        $region20: #{tpu_custom_call.1} parent=11 // pred_fallthru
          _
        // Predicated region
        $region21: #{tpu_custom_call.1} parent=11 // pred_check
          %p258 = pneg %p85
        $region22: #{tpu_custom_call.1} parent=11 // pred_check_branch
          %260 = sbr.rel (%p258) target = $region24
        $region23: #{tpu_custom_call.1} parent=11 // pred_region
          _
        $region24: #{tpu_custom_call.1} parent=11 // pred_fallthru
          _
        // Predicated region
        $region25: #{tpu_custom_call.1} parent=11 // pred_check
          %p261 = pneg %p106
        $region26: #{tpu_custom_call.1} parent=11 // pred_check_branch
          %263 = sbr.rel (%p261) target = $region28
        $region27: #{tpu_custom_call.1} parent=11 // pred_region
          _
        $region28: #{tpu_custom_call.1} parent=11 // pred_fallthru
          _
        // Predicated region
        $region29: #{tpu_custom_call.1} parent=11 // pred_check
          %p264 = pneg %p205
        $region30: #{tpu_custom_call.1} parent=11 // pred_check_branch
          %266 = sbr.rel (%p264) target = $region32
        $region31: #{tpu_custom_call.1} parent=11 // pred_region
          _
        $region32: #{tpu_custom_call.1} parent=11 // pred_fallthru
          _
      $region12: #{tpu_custom_call.1} parent=5 // pred_fallthru
        _
      %p267 = scmp.lt.s32.totalorder %s22, 4
      // Predicated region
      $region33: #{tpu_custom_call.1} parent=5 // pred_check
        %p268 = pneg %p267
      $region34: #{tpu_custom_call.1} parent=5 // pred_check_branch
        %270 = sbr.rel (%p268) target = $region36
      $region35: #{tpu_custom_call.1} parent=5 // pred_region
        // Predicated region
        $region37: #{tpu_custom_call.1} parent=35 // pred_check
          %p271 = pneg %p126
        $region38: #{tpu_custom_call.1} parent=35 // pred_check_branch
          %273 = sbr.rel (%p271) target = $region40
        $region39: #{tpu_custom_call.1} parent=35 // pred_region
          %s274 = sand.u32 %s22, 1
          %s275 = scalar_lea.sflag [#allocation8], %s274
          %s276 = sand.u32 %s116, 1
          %s277 = smul.addr %s276, 64
          %s278 = scalar_lea.vmem [#allocation7], %s277
          %s279 = smul.u32 4, %s22
          %281 = vsyncadd %s275, 0
          %s282 = smul.addr %s279, 4
          %s283 = scalar_lea.hbm %s4, %s282
          %s284 = sshll.u32 %s283, 4
          %s285 = int_to_ptr.hbm [resolvable:$true] %s284
          %s286 = sshll.u32 %s278, 4
          %s287 = int_to_ptr.vmem [resolvable:$true] %s286
          %292 = dma.hbm_to_vmem [thread:$0]  %s285, 1024, %s287, %s275, 1024, 256, 16
        $region40: #{tpu_custom_call.1} parent=35 // pred_fallthru
          _
        // Predicated region
        $region41: #{tpu_custom_call.1} parent=35 // pred_check
          %p293 = pneg %p152
        $region42: #{tpu_custom_call.1} parent=35 // pred_check_branch
          %295 = sbr.rel (%p293) target = $region44
        $region43: #{tpu_custom_call.1} parent=35 // pred_region
          %s296 = sand.u32 %s22, 1
          %s297 = scalar_lea.sflag [#allocation8], %s296
          %s298 = sand.u32 %s142, 1
          %s299 = smul.addr %s298, 4
          %s300 = scalar_lea.vmem [#allocation9], %s299
          %s301 = smul.u32 4, %s22
          %303 = vsyncadd %s297, 0
          %s304 = scalar_lea.hbm %s5, %s301
          %s306 = sshll.u32 %s304, 4
          %s307 = int_to_ptr.hbm [resolvable:$true] %s306
          %s308 = sshll.u32 %s300, 4
          %s309 = int_to_ptr.vmem [resolvable:$true] %s308
          %311 = dma.hbm_to_vmem [thread:$0]  %s307, 64, %s309, %s297
        $region44: #{tpu_custom_call.1} parent=35 // pred_fallthru
          _
        // Predicated region
        $region45: #{tpu_custom_call.1} parent=35 // pred_check
          %p312 = pneg %p178
        $region46: #{tpu_custom_call.1} parent=35 // pred_check_branch
          %314 = sbr.rel (%p312) target = $region48
        $region47: #{tpu_custom_call.1} parent=35 // pred_region
          %s315 = sand.u32 %s168, 1
          %s316 = scalar_lea.sflag [#allocation11], %s315
          %s317 = sand.u32 %s168, 1
          %s318 = smul.addr %s317, 64
          %s319 = scalar_lea.vmem [#allocation10], %s318
          %s320 = smul.u32 4, %s22
          %322 = vsyncadd %s316, 0
          %s323 = smul.addr %s320, 4
          %s324 = scalar_lea.hbm %s6, %s323
          %s325 = sshll.u32 %s324, 4
          %s326 = int_to_ptr.hbm [resolvable:$true] %s325
          %s327 = sshll.u32 %s319, 4
          %s328 = int_to_ptr.vmem [resolvable:$true] %s327
          %333 = dma.hbm_to_vmem [thread:$0]  %s326, 1024, %s328, %s316, 1024, 256, 16
        $region48: #{tpu_custom_call.1} parent=35 // pred_fallthru
          _
      $region36: #{tpu_custom_call.1} parent=5 // pred_fallthru
        _
      %p334 = scmp.le.s32.totalorder 1, %s22
      %p335 = scmp.lt.s32.totalorder %s22, 5
      %p336 = pnand %p334, %p335
      %p337 = pneg %p336
      // Predicated region
      $region49: #{tpu_custom_call.1} parent=5 // pred_check
        _
      $region50: #{tpu_custom_call.1} parent=5 // pred_check_branch
        %339 = sbr.rel (%p336) target = $region52
      $region51: #{tpu_custom_call.1} parent=5 // pred_region
        %s340 = ssub.s32 %s22, 1
        // Predicated region
        $region53: #{tpu_custom_call.1} parent=51 // pred_check
          %p341 = pneg %p43
        $region54: #{tpu_custom_call.1} parent=51 // pred_check_branch
          %343 = sbr.rel (%p341) target = $region56
        $region55: #{tpu_custom_call.1} parent=51 // pred_region
          %345 = dma.done [#allocation5], 256
        $region56: #{tpu_custom_call.1} parent=51 // pred_fallthru
          _
        %s346 = sand.u32 %s27, 1
        %s347 = scalar_lea.sflag [#allocation8], %s346
        %s348 = sand.u32 %s119, 1
        %s349 = smul.addr %s348, 64
        %s350 = scalar_lea.vmem [#allocation7], %s349
        // Predicated region
        $region57: #{tpu_custom_call.1} parent=51 // pred_check
          %p351 = pneg %p132
        $region58: #{tpu_custom_call.1} parent=51 // pred_check_branch
          %353 = sbr.rel (%p351) target = $region60
        $region59: #{tpu_custom_call.1} parent=51 // pred_region
          %355 = dma.done %s347, 1024
        $region60: #{tpu_custom_call.1} parent=51 // pred_fallthru
          _
        %s356 = sand.u32 %s27, 1
        %s357 = scalar_lea.sflag [#allocation8], %s356
        %s358 = sand.u32 %s145, 1
        %s359 = smul.addr %s358, 4
        %s360 = scalar_lea.vmem [#allocation9], %s359
        // Predicated region
        $region61: #{tpu_custom_call.1} parent=51 // pred_check
          %p361 = pneg %p158
        $region62: #{tpu_custom_call.1} parent=51 // pred_check_branch
          %363 = sbr.rel (%p361) target = $region64
        $region63: #{tpu_custom_call.1} parent=51 // pred_region
          %365 = dma.done %s357, 64
        $region64: #{tpu_custom_call.1} parent=51 // pred_fallthru
          _
        %s366 = sand.u32 %s171, 1
        %s367 = scalar_lea.sflag [#allocation11], %s366
        %s368 = sand.u32 %s171, 1
        %s369 = smul.addr %s368, 64
        %s370 = scalar_lea.vmem [#allocation10], %s369
        // Predicated region
        $region65: #{tpu_custom_call.1} parent=51 // pred_check
          %p371 = pneg %p184
        $region66: #{tpu_custom_call.1} parent=51 // pred_check_branch
          %373 = sbr.rel (%p371) target = $region68
        $region67: #{tpu_custom_call.1} parent=51 // pred_region
          %375 = dma.done %s367, 1024
        $region68: #{tpu_custom_call.1} parent=51 // pred_fallthru
          _
        %p376 = pneg %p43
        %p377 = pneg %p40
        %p378 = pneg %p64
        %p379 = pneg %p61
        %p380 = pneg %p85
        %p381 = pneg %p82
        %p382 = pneg %p106
        %p383 = pneg %p103
        %s384 = sand.u32 %s27, 1
        %s385 = scalar_lea.sflag [#allocation8], %s384
        %s386 = sand.u32 %s119, 1
        %s387 = smul.addr %s386, 64
        %s388 = scalar_lea.vmem [#allocation7], %s387
        %p389 = pneg %p132
        %p390 = pneg %p129
        %s391 = sand.u32 %s27, 1
        %s392 = scalar_lea.sflag [#allocation8], %s391
        %s393 = sand.u32 %s145, 1
        %s394 = smul.addr %s393, 4
        %s395 = scalar_lea.vmem [#allocation9], %s394
        %p396 = pneg %p158
        %p397 = pneg %p155
        %s398 = sand.u32 %s171, 1
        %s399 = scalar_lea.sflag [#allocation11], %s398
        %s400 = sand.u32 %s171, 1
        %s401 = smul.addr %s400, 64
        %s402 = scalar_lea.vmem [#allocation10], %s401
        %p403 = pneg %p184
        %p404 = pneg %p181
        %p405 = pneg %p205
        %p406 = pneg %p202
        %p407 = pneg %p226
        %p408 = pneg %p223
        %s409 = smul.u32 4, %s27
        %s410 = smul.u32 4, %s27
        %s411 = smul.u32 4, %s27
        %v413 = vld [vmem:[%s7] sm:$0xff]
        %v414 = vld [vmem:[%s7 + $0x8] sm:$0xff]
        %v415 = vld [vmem:[%s7 + $0x10] sm:$0xf]
        %p416 = scmp.eq.s32.totalorder %s27, 0
        // Predicated region
        $region69: #{tpu_custom_call.1} parent=51 // pred_check
          %p417 = pneg %p416
        $region70: #{tpu_custom_call.1} parent=51 // pred_check_branch
          %419 = sbr.rel (%p417) target = $region72
        $region71: #{tpu_custom_call.1} parent=51 // pred_region
          %v420 = vld [vmem:[#allocation4] sm:$0xff]
          %v421 = vld [vmem:[#allocation4 + $0x8] sm:$0xff]
          %v422 = vld [vmem:[%s1] sm:$0xff]
          %v423 = vld [vmem:[%s1 + $0x8] sm:$0xff]
          %v424 = vld [vmem:[%s1 + $0x10] sm:$0xff]
          %v425 = vld [vmem:[%s1 + $0x18] sm:$0xff]
          %vm426 = vcmask 261120
          %v428 = vsel %vm426, %v420, 0
          %v431 = vsel %vm426, %v421, 0
          %433 = vmatpush.msra.mxu0 0.0
          %434 = vmatpush.msra.mxu0 0.0
          %435 = vmatpush.msra.mxu0 0.0
          %436 = vmatpush.msra.mxu0 0.0
          %437 = vmatpush.msra.mxu0 0.0
          %438 = vmatpush.msra.mxu0 0.0
          %439 = vmatpush.msra.mxu0 0.0
          %440 = vmatpush.msra.mxu0 0.0
          %441 = vmatpush.msra.mxu0 0.0
          %442 = vmatpush.msra.mxu0 0.0
          %443 = vmatpush.msra.mxu0 0.0
          %444 = vmatpush.msra.mxu0 0.0
          %445 = vmatpush.msra.mxu0 %v425
          %446 = vmatpush.msra.mxu0 %v424
          %447 = vmatpush.msra.mxu0 %v423
          %448 = vmatpush.msra.mxu0 %v422
          %449 = vmatmul.f32.gmra.mxu0 %v428
          %v450 = vpop.f32.mrf.mxu0
          %v451 = vadd.f32 0.0, %v450
          %452 = vmatmul.f32.gmra.mxu0 %v431
          %v453 = vpop.f32.mrf.mxu0
          %v454 = vadd.f32 0.0, %v453
          %455 = vdwg.mxu0
          %v456 = vperm.slane %v413, 0
          %v457 = vadd.f32 %v451, %v456
          %v458 = vadd.f32 %v454, %v456
          %v459 = vperm.slane %v413, 1
          %461 = vrot.lane.b32.xlu0 %v459, 32
          %v462 = vpop.permute.xlu0 %461
          %v464 = vadd.f32 %v451, %v462
          %v465 = vadd.f32 %v454, %v462
          %v466 = vperm.slane %v413, 2
          %468 = vrot.lane.b32.xlu0 %v466, 64
          %v469 = vpop.permute.xlu0 %468
          %v471 = vadd.f32 %v451, %v469
          %v472 = vadd.f32 %v454, %v469
          %v473 = vlaneseq
          %v474 = vshrl.u32 %v473, 7
          %v475 = vadd.s32 %v474, 8
          %v476 = vlaneseq
          %v477 = vand.u32 %v476, 127
          %v478 = vand.u32 %v474, 1
          %v479 = vand.u32 %v475, 1
          %v480 = vand.u32 %v477, 1
          %vm481 = vcmp.eq.s32.totalorder %v478, %v480
          %vm482 = vcmp.eq.s32.totalorder %v479, %v480
          %v483 = vsel %vm481, 0.0, -1e+30
          %v484 = vsel %vm482, 0.0, -1e+30
          %v485 = vperm.slane %v413, 3
          %v486 = vadd.f32 %v420, %v485
          %v487 = vadd.f32 %v421, %v485
          %490 = vrot.lane.b32.xlu0 %v464, 96
          %v491 = vpop.permute.xlu0 %490
          %492 = vrot.lane.b32.xlu0 %v465, 96
          %v493 = vpop.permute.xlu0 %492
          %vm494 = vcmask 64512
          %v496 = vsel %vm494, %v457, 0
          %v499 = vsel %vm494, %v458, 0
          %v501 = vsel %vm494, %v491, 0
          %v503 = vsel %vm494, %v493, 0
          %505 = vmatpush.xpose.msra.mxu0 0.0
          %506 = vmatpush.xpose.msra.mxu0 0.0
          %507 = vmatpush.xpose.msra.mxu0 0.0
          %508 = vmatpush.xpose.msra.mxu0 0.0
          %509 = vmatpush.xpose.msra.mxu0 0.0
          %510 = vmatpush.xpose.msra.mxu0 0.0
          %511 = vmatpush.xpose.msra.mxu0 0.0
          %512 = vmatpush.xpose.msra.mxu0 0.0
          %513 = vmatpush.xpose.msra.mxu0 0.0
          %514 = vmatpush.xpose.msra.mxu0 0.0
          %515 = vmatpush.xpose.msra.mxu0 0.0
          %516 = vmatpush.xpose.msra.mxu0 0.0
          %517 = vmatpush.xpose.msra.mxu0 0.0
          %518 = vmatpush.xpose.msra.mxu0 0.0
          %519 = vmatpush.xpose.msra.mxu0 %v503
          %520 = vmatpush.xpose.msra.mxu0 %v501
          %521 = vmatmul.f32.gmra.mxu0 %v496
          %v522 = vpop.f32.mrf.mxu0
          %v523 = vadd.f32 %v483, %v522
          %524 = vmatmul.f32.gmra.mxu0 %v499
          %v525 = vpop.f32.mrf.mxu0
          %v526 = vadd.f32 %v484, %v525
          %527 = vdwg.mxu0
          %vm528 = vcmask 130048
          %v529 = vsel %vm528, %v523, -inf
          %530 = vmax.xlane.f32.xlu0 %v529
          %v531 = vpop.xlane.xlu0 %530
          %v532 = vsel %vm528, %v526, -inf
          %533 = vmax.xlane.f32.xlu0 %v532
          %v534 = vpop.xlane.xlu0 %533
          %v535 = vsub.f32 %v523, %v531
          %v536 = vsub.f32 %v526, %v534
          %v537 = vmul.f32 %v535, 1.442695
          %v538 = vpow.pop %v537
          %v539 = vmul.f32 %v536, 1.442695
          %v540 = vpow.pop %v539
          %v541 = vsel %vm528, %v538, 0.0
          %542 = vadd.xlane.f32.xlu0 %v541
          %v543 = vpop.xlane.xlu0 %542
          %v544 = vsel %vm528, %v540, 0.0
          %545 = vadd.xlane.f32.xlu0 %v544
          %v546 = vpop.xlane.xlu0 %545
          %v547 = vrcp.pop %v543
          %v548 = vrcp.pop %v546
          %v549 = vmul.f32 %v538, %v547
          %v550 = vmul.f32 %v540, %v548
          %553 = vrot.lane.b32.xlu0 %v471, 64
          %v554 = vpop.permute.xlu0 %553
          %555 = vrot.lane.b32.xlu0 %v472, 64
          %v556 = vpop.permute.xlu0 %555
          %v560 = vsel %vm528, %v549, 0
          %v563 = vsel %vm528, %v550, 0
          %565 = vmatpush.msra.mxu0 0.0
          %566 = vmatpush.msra.mxu0 0.0
          %567 = vmatpush.msra.mxu0 0.0
          %568 = vmatpush.msra.mxu0 0.0
          %569 = vmatpush.msra.mxu0 0.0
          %570 = vmatpush.msra.mxu0 0.0
          %571 = vmatpush.msra.mxu0 0.0
          %572 = vmatpush.msra.mxu0 0.0
          %573 = vmatpush.msra.mxu0 0.0
          %574 = vmatpush.msra.mxu0 0.0
          %575 = vmatpush.msra.mxu0 0.0
          %576 = vmatpush.msra.mxu0 0.0
          %577 = vmatpush.msra.mxu0 0.0
          %578 = vmatpush.msra.mxu0 0.0
          %579 = vmatpush.msra.mxu0 %v556
          %580 = vmatpush.msra.mxu0 %v554
          %581 = vmatmul.f32.gmra.mxu0 %v560
          %v582 = vpop.f32.mrf.mxu0
          %v583 = vadd.f32 0.0, %v582
          %584 = vmatmul.f32.gmra.mxu0 %v563
          %v585 = vpop.f32.mrf.mxu0
          %v586 = vadd.f32 0.0, %v585
          %587 = vdwg.mxu0
          %589 = vrot.lane.b32.xlu0 %v422, 32
          %v590 = vpop.permute.xlu0 %589
          %v593 = vsel %vm494, %v583, 0
          %v596 = vsel %vm494, %v586, 0
          %598 = vmatpush.msra.mxu0 0.0
          %599 = vmatpush.msra.mxu0 0.0
          %600 = vmatpush.msra.mxu0 0.0
          %601 = vmatpush.msra.mxu0 0.0
          %602 = vmatpush.msra.mxu0 0.0
          %603 = vmatpush.msra.mxu0 0.0
          %604 = vmatpush.msra.mxu0 0.0
          %605 = vmatpush.msra.mxu0 0.0
          %606 = vmatpush.msra.mxu0 0.0
          %607 = vmatpush.msra.mxu0 0.0
          %608 = vmatpush.msra.mxu0 0.0
          %609 = vmatpush.msra.mxu0 0.0
          %610 = vmatpush.msra.mxu0 0.0
          %611 = vmatpush.msra.mxu0 0.0
          %612 = vmatpush.msra.mxu0 0.0
          %613 = vmatpush.msra.mxu0 %v590
          %614 = vmatmul.f32.gmra.mxu0 %v593
          %v615 = vpop.f32.mrf.mxu0
          %v616 = vadd.f32 0.0, %v615
          %617 = vmatmul.f32.gmra.mxu0 %v596
          %v618 = vpop.f32.mrf.mxu0
          %v619 = vadd.f32 0.0, %v618
          %620 = vdwg.mxu0
          %v621 = vadd.f32 %v486, %v616
          %v622 = vadd.f32 %v487, %v619
          %623 = vrot.lane.b32.xlu0 %v457, 120
          %v624 = vpop.permute.xlu0 %623
          %625 = vrot.lane.b32.xlu0 %v458, 120
          %v626 = vpop.permute.xlu0 %625
          %627 = vrot.lane.b32.xlu0 %v464, 88
          %v628 = vpop.permute.xlu0 %627
          %629 = vrot.lane.b32.xlu0 %v465, 88
          %v630 = vpop.permute.xlu0 %629
          %v631 = vsel %vm494, %v624, 0
          %v633 = vsel %vm494, %v626, 0
          %v635 = vsel %vm494, %v628, 0
          %v637 = vsel %vm494, %v630, 0
          %639 = vmatpush.xpose.msra.mxu0 0.0
          %640 = vmatpush.xpose.msra.mxu0 0.0
          %641 = vmatpush.xpose.msra.mxu0 0.0
          %642 = vmatpush.xpose.msra.mxu0 0.0
          %643 = vmatpush.xpose.msra.mxu0 0.0
          %644 = vmatpush.xpose.msra.mxu0 0.0
          %645 = vmatpush.xpose.msra.mxu0 0.0
          %646 = vmatpush.xpose.msra.mxu0 0.0
          %647 = vmatpush.xpose.msra.mxu0 0.0
          %648 = vmatpush.xpose.msra.mxu0 0.0
          %649 = vmatpush.xpose.msra.mxu0 0.0
          %650 = vmatpush.xpose.msra.mxu0 0.0
          %651 = vmatpush.xpose.msra.mxu0 0.0
          %652 = vmatpush.xpose.msra.mxu0 0.0
          %653 = vmatpush.xpose.msra.mxu0 %v637
          %654 = vmatpush.xpose.msra.mxu0 %v635
          %655 = vmatmul.f32.gmra.mxu0 %v631
          %v656 = vpop.f32.mrf.mxu0
          %v657 = vadd.f32 %v483, %v656
          %658 = vmatmul.f32.gmra.mxu0 %v633
          %v659 = vpop.f32.mrf.mxu0
          %v660 = vadd.f32 %v484, %v659
          %661 = vdwg.mxu0
          %v662 = vsel %vm528, %v657, -inf
          %663 = vmax.xlane.f32.xlu0 %v662
          %v664 = vpop.xlane.xlu0 %663
          %v665 = vsel %vm528, %v660, -inf
          %666 = vmax.xlane.f32.xlu0 %v665
          %v667 = vpop.xlane.xlu0 %666
          %v668 = vsub.f32 %v657, %v664
          %v669 = vsub.f32 %v660, %v667
          %v670 = vmul.f32 %v668, 1.442695
          %v671 = vpow.pop %v670
          %v672 = vmul.f32 %v669, 1.442695
          %v673 = vpow.pop %v672
          %v674 = vsel %vm528, %v671, 0.0
          %675 = vadd.xlane.f32.xlu0 %v674
          %v676 = vpop.xlane.xlu0 %675
          %v677 = vsel %vm528, %v673, 0.0
          %678 = vadd.xlane.f32.xlu0 %v677
          %v679 = vpop.xlane.xlu0 %678
          %v680 = vrcp.pop %v676
          %v681 = vrcp.pop %v679
          %v682 = vmul.f32 %v671, %v680
          %v683 = vmul.f32 %v673, %v681
          %684 = vrot.lane.b32.xlu0 %v471, 56
          %v685 = vpop.permute.xlu0 %684
          %686 = vrot.lane.b32.xlu0 %v472, 56
          %v687 = vpop.permute.xlu0 %686
          %v691 = vsel %vm528, %v682, 0
          %v694 = vsel %vm528, %v683, 0
          %696 = vmatpush.msra.mxu0 0.0
          %697 = vmatpush.msra.mxu0 0.0
          %698 = vmatpush.msra.mxu0 0.0
          %699 = vmatpush.msra.mxu0 0.0
          %700 = vmatpush.msra.mxu0 0.0
          %701 = vmatpush.msra.mxu0 0.0
          %702 = vmatpush.msra.mxu0 0.0
          %703 = vmatpush.msra.mxu0 0.0
          %704 = vmatpush.msra.mxu0 0.0
          %705 = vmatpush.msra.mxu0 0.0
          %706 = vmatpush.msra.mxu0 0.0
          %707 = vmatpush.msra.mxu0 0.0
          %708 = vmatpush.msra.mxu0 0.0
          %709 = vmatpush.msra.mxu0 0.0
          %710 = vmatpush.msra.mxu0 %v687
          %711 = vmatpush.msra.mxu0 %v685
          %712 = vmatmul.f32.gmra.mxu0 %v691
          %v713 = vpop.f32.mrf.mxu0
          %v714 = vadd.f32 0.0, %v713
          %715 = vmatmul.f32.gmra.mxu0 %v694
          %v716 = vpop.f32.mrf.mxu0
          %v717 = vadd.f32 0.0, %v716
          %718 = vdwg.mxu0
          %720 = vrot.lane.b32.xlu0 %v423, 32
          %v721 = vpop.permute.xlu0 %720
          %v724 = vsel %vm494, %v714, 0
          %v727 = vsel %vm494, %v717, 0
          %729 = vmatpush.msra.mxu0 0.0
          %730 = vmatpush.msra.mxu0 0.0
          %731 = vmatpush.msra.mxu0 0.0
          %732 = vmatpush.msra.mxu0 0.0
          %733 = vmatpush.msra.mxu0 0.0
          %734 = vmatpush.msra.mxu0 0.0
          %735 = vmatpush.msra.mxu0 0.0
          %736 = vmatpush.msra.mxu0 0.0
          %737 = vmatpush.msra.mxu0 0.0
          %738 = vmatpush.msra.mxu0 0.0
          %739 = vmatpush.msra.mxu0 0.0
          %740 = vmatpush.msra.mxu0 0.0
          %741 = vmatpush.msra.mxu0 0.0
          %742 = vmatpush.msra.mxu0 0.0
          %743 = vmatpush.msra.mxu0 0.0
          %744 = vmatpush.msra.mxu0 %v721
          %745 = vmatmul.f32.gmra.mxu0 %v724
          %v746 = vpop.f32.mrf.mxu0
          %v747 = vadd.f32 0.0, %v746
          %748 = vmatmul.f32.gmra.mxu0 %v727
          %v749 = vpop.f32.mrf.mxu0
          %v750 = vadd.f32 0.0, %v749
          %751 = vdwg.mxu0
          %v752 = vadd.f32 %v621, %v747
          %v753 = vadd.f32 %v622, %v750
          %754 = vrot.lane.b32.xlu0 %v457, 112
          %v755 = vpop.permute.xlu0 %754
          %756 = vrot.lane.b32.xlu0 %v458, 112
          %v757 = vpop.permute.xlu0 %756
          %758 = vrot.lane.b32.xlu0 %v464, 80
          %v759 = vpop.permute.xlu0 %758
          %760 = vrot.lane.b32.xlu0 %v465, 80
          %v761 = vpop.permute.xlu0 %760
          %v762 = vsel %vm494, %v755, 0
          %v764 = vsel %vm494, %v757, 0
          %v766 = vsel %vm494, %v759, 0
          %v768 = vsel %vm494, %v761, 0
          %770 = vmatpush.xpose.msra.mxu0 0.0
          %771 = vmatpush.xpose.msra.mxu0 0.0
          %772 = vmatpush.xpose.msra.mxu0 0.0
          %773 = vmatpush.xpose.msra.mxu0 0.0
          %774 = vmatpush.xpose.msra.mxu0 0.0
          %775 = vmatpush.xpose.msra.mxu0 0.0
          %776 = vmatpush.xpose.msra.mxu0 0.0
          %777 = vmatpush.xpose.msra.mxu0 0.0
          %778 = vmatpush.xpose.msra.mxu0 0.0
          %779 = vmatpush.xpose.msra.mxu0 0.0
          %780 = vmatpush.xpose.msra.mxu0 0.0
          %781 = vmatpush.xpose.msra.mxu0 0.0
          %782 = vmatpush.xpose.msra.mxu0 0.0
          %783 = vmatpush.xpose.msra.mxu0 0.0
          %784 = vmatpush.xpose.msra.mxu0 %v768
          %785 = vmatpush.xpose.msra.mxu0 %v766
          %786 = vmatmul.f32.gmra.mxu0 %v762
          %v787 = vpop.f32.mrf.mxu0
          %v788 = vadd.f32 %v483, %v787
          %789 = vmatmul.f32.gmra.mxu0 %v764
          %v790 = vpop.f32.mrf.mxu0
          %v791 = vadd.f32 %v484, %v790
          %792 = vdwg.mxu0
          %v793 = vsel %vm528, %v788, -inf
          %794 = vmax.xlane.f32.xlu0 %v793
          %v795 = vpop.xlane.xlu0 %794
          %v796 = vsel %vm528, %v791, -inf
          %797 = vmax.xlane.f32.xlu0 %v796
          %v798 = vpop.xlane.xlu0 %797
          %v799 = vsub.f32 %v788, %v795
          %v800 = vsub.f32 %v791, %v798
          %v801 = vmul.f32 %v799, 1.442695
          %v802 = vpow.pop %v801
          %v803 = vmul.f32 %v800, 1.442695
          %v804 = vpow.pop %v803
          %v805 = vsel %vm528, %v802, 0.0
          %806 = vadd.xlane.f32.xlu0 %v805
          %v807 = vpop.xlane.xlu0 %806
          %v808 = vsel %vm528, %v804, 0.0
          %809 = vadd.xlane.f32.xlu0 %v808
          %v810 = vpop.xlane.xlu0 %809
          %v811 = vrcp.pop %v807
          %v812 = vrcp.pop %v810
          %v813 = vmul.f32 %v802, %v811
          %v814 = vmul.f32 %v804, %v812
          %815 = vrot.lane.b32.xlu0 %v471, 48
          %v816 = vpop.permute.xlu0 %815
          %817 = vrot.lane.b32.xlu0 %v472, 48
          %v818 = vpop.permute.xlu0 %817
          %v822 = vsel %vm528, %v813, 0
          %v825 = vsel %vm528, %v814, 0
          %827 = vmatpush.msra.mxu0 0.0
          %828 = vmatpush.msra.mxu0 0.0
          %829 = vmatpush.msra.mxu0 0.0
          %830 = vmatpush.msra.mxu0 0.0
          %831 = vmatpush.msra.mxu0 0.0
          %832 = vmatpush.msra.mxu0 0.0
          %833 = vmatpush.msra.mxu0 0.0
          %834 = vmatpush.msra.mxu0 0.0
          %835 = vmatpush.msra.mxu0 0.0
          %836 = vmatpush.msra.mxu0 0.0
          %837 = vmatpush.msra.mxu0 0.0
          %838 = vmatpush.msra.mxu0 0.0
          %839 = vmatpush.msra.mxu0 0.0
          %840 = vmatpush.msra.mxu0 0.0
          %841 = vmatpush.msra.mxu0 %v818
          %842 = vmatpush.msra.mxu0 %v816
          %843 = vmatmul.f32.gmra.mxu0 %v822
          %v844 = vpop.f32.mrf.mxu0
          %v845 = vadd.f32 0.0, %v844
          %846 = vmatmul.f32.gmra.mxu0 %v825
          %v847 = vpop.f32.mrf.mxu0
          %v848 = vadd.f32 0.0, %v847
          %849 = vdwg.mxu0
          %851 = vrot.lane.b32.xlu0 %v424, 32
          %v852 = vpop.permute.xlu0 %851
          %v855 = vsel %vm494, %v845, 0
          %v858 = vsel %vm494, %v848, 0
          %860 = vmatpush.msra.mxu0 0.0
          %861 = vmatpush.msra.mxu0 0.0
          %862 = vmatpush.msra.mxu0 0.0
          %863 = vmatpush.msra.mxu0 0.0
          %864 = vmatpush.msra.mxu0 0.0
          %865 = vmatpush.msra.mxu0 0.0
          %866 = vmatpush.msra.mxu0 0.0
          %867 = vmatpush.msra.mxu0 0.0
          %868 = vmatpush.msra.mxu0 0.0
          %869 = vmatpush.msra.mxu0 0.0
          %870 = vmatpush.msra.mxu0 0.0
          %871 = vmatpush.msra.mxu0 0.0
          %872 = vmatpush.msra.mxu0 0.0
          %873 = vmatpush.msra.mxu0 0.0
          %874 = vmatpush.msra.mxu0 0.0
          %875 = vmatpush.msra.mxu0 %v852
          %876 = vmatmul.f32.gmra.mxu0 %v855
          %v877 = vpop.f32.mrf.mxu0
          %v878 = vadd.f32 0.0, %v877
          %879 = vmatmul.f32.gmra.mxu0 %v858
          %v880 = vpop.f32.mrf.mxu0
          %v881 = vadd.f32 0.0, %v880
          %882 = vdwg.mxu0
          %v883 = vadd.f32 %v752, %v878
          %v884 = vadd.f32 %v753, %v881
          %885 = vrot.lane.b32.xlu0 %v457, 104
          %v886 = vpop.permute.xlu0 %885
          %887 = vrot.lane.b32.xlu0 %v458, 104
          %v888 = vpop.permute.xlu0 %887
          %889 = vrot.lane.b32.xlu0 %v464, 72
          %v890 = vpop.permute.xlu0 %889
          %891 = vrot.lane.b32.xlu0 %v465, 72
          %v892 = vpop.permute.xlu0 %891
          %v893 = vsel %vm494, %v886, 0
          %v895 = vsel %vm494, %v888, 0
          %v897 = vsel %vm494, %v890, 0
          %v899 = vsel %vm494, %v892, 0
          %901 = vmatpush.xpose.msra.mxu0 0.0
          %902 = vmatpush.xpose.msra.mxu0 0.0
          %903 = vmatpush.xpose.msra.mxu0 0.0
          %904 = vmatpush.xpose.msra.mxu0 0.0
          %905 = vmatpush.xpose.msra.mxu0 0.0
          %906 = vmatpush.xpose.msra.mxu0 0.0
          %907 = vmatpush.xpose.msra.mxu0 0.0
          %908 = vmatpush.xpose.msra.mxu0 0.0
          %909 = vmatpush.xpose.msra.mxu0 0.0
          %910 = vmatpush.xpose.msra.mxu0 0.0
          %911 = vmatpush.xpose.msra.mxu0 0.0
          %912 = vmatpush.xpose.msra.mxu0 0.0
          %913 = vmatpush.xpose.msra.mxu0 0.0
          %914 = vmatpush.xpose.msra.mxu0 0.0
          %915 = vmatpush.xpose.msra.mxu0 %v899
          %916 = vmatpush.xpose.msra.mxu0 %v897
          %917 = vmatmul.f32.gmra.mxu0 %v893
          %v918 = vpop.f32.mrf.mxu0
          %v919 = vadd.f32 %v483, %v918
          %920 = vmatmul.f32.gmra.mxu0 %v895
          %v921 = vpop.f32.mrf.mxu0
          %v922 = vadd.f32 %v484, %v921
          %923 = vdwg.mxu0
          %v924 = vsel %vm528, %v919, -inf
          %925 = vmax.xlane.f32.xlu0 %v924
          %v926 = vpop.xlane.xlu0 %925
          %v927 = vsel %vm528, %v922, -inf
          %928 = vmax.xlane.f32.xlu0 %v927
          %v929 = vpop.xlane.xlu0 %928
          %v930 = vsub.f32 %v919, %v926
          %v931 = vsub.f32 %v922, %v929
          %v932 = vmul.f32 %v930, 1.442695
          %v933 = vpow.pop %v932
          %v934 = vmul.f32 %v931, 1.442695
          %v935 = vpow.pop %v934
          %v936 = vsel %vm528, %v933, 0.0
          %937 = vadd.xlane.f32.xlu0 %v936
          %v938 = vpop.xlane.xlu0 %937
          %v939 = vsel %vm528, %v935, 0.0
          %940 = vadd.xlane.f32.xlu0 %v939
          %v941 = vpop.xlane.xlu0 %940
          %v942 = vrcp.pop %v938
          %v943 = vrcp.pop %v941
          %v944 = vmul.f32 %v933, %v942
          %v945 = vmul.f32 %v935, %v943
          %946 = vrot.lane.b32.xlu0 %v471, 40
          %v947 = vpop.permute.xlu0 %946
          %948 = vrot.lane.b32.xlu0 %v472, 40
          %v949 = vpop.permute.xlu0 %948
          %v953 = vsel %vm528, %v944, 0
          %v956 = vsel %vm528, %v945, 0
          %958 = vmatpush.msra.mxu0 0.0
          %959 = vmatpush.msra.mxu0 0.0
          %960 = vmatpush.msra.mxu0 0.0
          %961 = vmatpush.msra.mxu0 0.0
          %962 = vmatpush.msra.mxu0 0.0
          %963 = vmatpush.msra.mxu0 0.0
          %964 = vmatpush.msra.mxu0 0.0
          %965 = vmatpush.msra.mxu0 0.0
          %966 = vmatpush.msra.mxu0 0.0
          %967 = vmatpush.msra.mxu0 0.0
          %968 = vmatpush.msra.mxu0 0.0
          %969 = vmatpush.msra.mxu0 0.0
          %970 = vmatpush.msra.mxu0 0.0
          %971 = vmatpush.msra.mxu0 0.0
          %972 = vmatpush.msra.mxu0 %v949
          %973 = vmatpush.msra.mxu0 %v947
          %974 = vmatmul.f32.gmra.mxu0 %v953
          %v975 = vpop.f32.mrf.mxu0
          %v976 = vadd.f32 0.0, %v975
          %977 = vmatmul.f32.gmra.mxu0 %v956
          %v978 = vpop.f32.mrf.mxu0
          %v979 = vadd.f32 0.0, %v978
          %980 = vdwg.mxu0
          %982 = vrot.lane.b32.xlu0 %v425, 32
          %v983 = vpop.permute.xlu0 %982
          %v986 = vsel %vm494, %v976, 0
          %v989 = vsel %vm494, %v979, 0
          %991 = vmatpush.msra.mxu0 0.0
          %992 = vmatpush.msra.mxu0 0.0
          %993 = vmatpush.msra.mxu0 0.0
          %994 = vmatpush.msra.mxu0 0.0
          %995 = vmatpush.msra.mxu0 0.0
          %996 = vmatpush.msra.mxu0 0.0
          %997 = vmatpush.msra.mxu0 0.0
          %998 = vmatpush.msra.mxu0 0.0
          %999 = vmatpush.msra.mxu0 0.0
          %1000 = vmatpush.msra.mxu0 0.0
          %1001 = vmatpush.msra.mxu0 0.0
          %1002 = vmatpush.msra.mxu0 0.0
          %1003 = vmatpush.msra.mxu0 0.0
          %1004 = vmatpush.msra.mxu0 0.0
          %1005 = vmatpush.msra.mxu0 0.0
          %1006 = vmatpush.msra.mxu0 %v983
          %1007 = vmatmul.f32.gmra.mxu0 %v986
          %v1008 = vpop.f32.mrf.mxu0
          %v1009 = vadd.f32 0.0, %v1008
          %1010 = vmatmul.f32.gmra.mxu0 %v989
          %v1011 = vpop.f32.mrf.mxu0
          %v1012 = vadd.f32 0.0, %v1011
          %1013 = vdwg.mxu0
          %v1014 = vadd.f32 %v883, %v1009
          %v1015 = vadd.f32 %v884, %v1012
          %v1016 = vsel %vm426, %v1014, 0.0
          %1017 = vadd.xlane.f32.xlu0 %v1016
          %v1018 = vpop.xlane.xlu0 %1017
          %v1019 = vsel %vm426, %v1015, 0.0
          %1020 = vadd.xlane.f32.xlu0 %v1019
          %v1021 = vpop.xlane.xlu0 %1020
          %v1022 = vrcp.pop 32.0
          %v1023 = vmul.f32 32.0, %v1022
          %v1024 = vsub.f32 1.0, %v1023
          %v1025 = vmul.f32 %v1022, %v1024
          %v1026 = vadd.f32 %v1022, %v1025
          %vm1027 = vweird.f32 %v1022
          %v1028 = vsel %vm1027, %v1022, %v1026
          %v1029 = vmul.f32 %v1018, %v1028
          %v1030 = vmul.f32 %v1021, %v1028
          %v1031 = vsub.f32 %v1014, %v1029
          %v1032 = vsub.f32 %v1015, %v1030
          %v1033 = vmul.f32 %v1031, %v1031
          %v1034 = vmul.f32 %v1032, %v1032
          %v1035 = vsel %vm426, %v1033, 0.0
          %1036 = vadd.xlane.f32.xlu0 %v1035
          %v1037 = vpop.xlane.xlu0 %1036
          %v1038 = vsel %vm426, %v1034, 0.0
          %1039 = vadd.xlane.f32.xlu0 %v1038
          %v1040 = vpop.xlane.xlu0 %1039
          %v1041 = vmul.f32 %v1037, %v1028
          %v1042 = vmul.f32 %v1040, %v1028
          %v1043 = vadd.f32 %v1041, 1e-05
          %v1044 = vadd.f32 %v1042, 1e-05
          %v1045 = vrsqrt.pop %v1043
          %v1046 = vmul.f32 %v1045, %v1043
          %v1047 = vmul.f32 %v1046, %v1045
          %v1048 = vmul.f32 0.5, %v1047
          %v1049 = vsub.f32 1.5, %v1048
          %v1050 = vmul.f32 %v1045, %v1049
          %vm1051 = vweird.f32 %v1043
          %vm1052 = vweird.f32 %v1045
          %vm1053 = vmor %vm1051, %vm1052
          %v1054 = vsel %vm1053, %v1045, %v1050
          %v1055 = vrsqrt.pop %v1044
          %v1056 = vmul.f32 %v1055, %v1044
          %v1057 = vmul.f32 %v1056, %v1055
          %v1058 = vmul.f32 0.5, %v1057
          %v1059 = vsub.f32 1.5, %v1058
          %v1060 = vmul.f32 %v1055, %v1059
          %vm1061 = vweird.f32 %v1044
          %vm1062 = vweird.f32 %v1055
          %vm1063 = vmor %vm1061, %vm1062
          %v1064 = vsel %vm1063, %v1055, %v1060
          %v1065 = vmul.f32 %v1031, %v1054
          %v1066 = vmul.f32 %v1032, %v1064
          %v1067 = vperm.slane %v413, 4
          %v1068 = vmul.f32 %v1065, %v1067
          %v1069 = vmul.f32 %v1066, %v1067
          %v1070 = vperm.slane %v413, 5
          %v1071 = vadd.f32 %v1068, %v1070
          %v1072 = vadd.f32 %v1069, %v1070
          %1073 = vst.msk [vmem:[#allocation2] sm:$0xff] %vm426, %v1071
          %1074 = vst.msk [vmem:[#allocation2 + $0x8] sm:$0xff] %vm426, %v1072
          %1075 = vst.msk [vmem:[#allocation3] sm:$0xff] %vm426, 0.0
          %1076 = vst.msk [vmem:[#allocation3 + $0x8] sm:$0xff] %vm426, 0.0
        $region72: #{tpu_custom_call.1} parent=51 // pred_fallthru
          _
        %v1077 = vld [vmem:[#allocation2] sm:$0xff]
        %v1078 = vld [vmem:[#allocation2 + $0x8] sm:$0xff]
        %v1079 = vpack.c.bf16 %v1078, %v1077
        %v1080 = vld [vmem:[%s350] sm:$0xff]
        %v1081 = vld [vmem:[%s350 + $0x8] sm:$0xff]
        %v1082 = vld [vmem:[%s350 + $0x10] sm:$0xff]
        %v1083 = vld [vmem:[%s350 + $0x18] sm:$0xff]
        %v1084 = vld [vmem:[%s350 + $0x20] sm:$0xff]
        %v1085 = vld [vmem:[%s350 + $0x28] sm:$0xff]
        %v1086 = vld [vmem:[%s350 + $0x30] sm:$0xff]
        %v1087 = vld [vmem:[%s350 + $0x38] sm:$0xff]
        %v1088 = vld [vmem:[%s360] sm:$0xf]
        %v1090 = vperm.slane %v1088, 0
        %v1091 = vperm.slane %v1088, 1
        %v1092 = vperm.slane %v1088, 2
        %v1093 = vperm.slane %v1088, 3
        %v1106 = vunpack.c.l.b16 %v1080
        %v1107 = vunpack.c.h.b16 %v1080
        %v1108 = vunpack.c.l.b16 %v1081
        %v1109 = vunpack.c.h.b16 %v1081
        %v1110 = vunpack.c.l.b16 %v1082
        %v1111 = vunpack.c.h.b16 %v1082
        %v1112 = vunpack.c.l.b16 %v1083
        %v1113 = vunpack.c.h.b16 %v1083
        %v1114 = vunpack.c.l.b16 %v1084
        %v1115 = vunpack.c.h.b16 %v1084
        %v1116 = vunpack.c.l.b16 %v1085
        %v1117 = vunpack.c.h.b16 %v1085
        %v1118 = vunpack.c.l.b16 %v1086
        %v1119 = vunpack.c.h.b16 %v1086
        %v1120 = vunpack.c.l.b16 %v1087
        %v1121 = vunpack.c.h.b16 %v1087
        %v1122 = vpack.c.b16 %v1110, %v1106
        %v1123 = vpack.c.b16 %v1111, %v1107
        %v1124 = vpack.c.b16 %v1112, %v1108
        %v1125 = vpack.c.b16 %v1113, %v1109
        %v1126 = vpack.c.b16 %v1118, %v1114
        %v1127 = vpack.c.b16 %v1119, %v1115
        %v1128 = vpack.c.b16 %v1120, %v1116
        %v1129 = vpack.c.b16 %v1121, %v1117
        %vm1138 = vcmask 261120
        %v1140 = vsel %vm1138, %v1079, 0
        %1142 = vmatpush.bf16.msra.mxu0 0
        %1143 = vmatpush.bf16.msra.mxu0 0
        %1144 = vmatpush.bf16.msra.mxu0 0
        %1145 = vmatpush.bf16.msra.mxu0 0
        %1146 = vmatpush.bf16.msra.mxu0 0
        %1147 = vmatpush.bf16.msra.mxu0 0
        %1148 = vmatpush.bf16.msra.mxu0 %v1126
        %1149 = vmatpush.bf16.msra.mxu0 %v1122
        %1150 = vmatmul.bf16.gmra.mxu0 %v1140
        %v1151 = vpop.f32.mrf.mxu0
        %v1152 = vadd.f32 %v1090, %v1151
        %v1153 = vpop.f32.mrf.mxu0
        %v1154 = vadd.f32 %v1090, %v1153
        %1155 = vdwg.mxu0
        %1156 = vmatpush.bf16.msra.mxu0 0
        %1157 = vmatpush.bf16.msra.mxu0 0
        %1158 = vmatpush.bf16.msra.mxu0 0
        %1159 = vmatpush.bf16.msra.mxu0 0
        %1160 = vmatpush.bf16.msra.mxu0 0
        %1161 = vmatpush.bf16.msra.mxu0 0
        %1162 = vmatpush.bf16.msra.mxu0 %v1127
        %1163 = vmatpush.bf16.msra.mxu0 %v1123
        %1164 = vmatmul.bf16.gmra.mxu0 %v1140
        %v1165 = vpop.f32.mrf.mxu0
        %v1166 = vadd.f32 %v1091, %v1165
        %v1167 = vpop.f32.mrf.mxu0
        %v1168 = vadd.f32 %v1091, %v1167
        %1169 = vdwg.mxu0
        %1170 = vmatpush.bf16.msra.mxu0 0
        %1171 = vmatpush.bf16.msra.mxu0 0
        %1172 = vmatpush.bf16.msra.mxu0 0
        %1173 = vmatpush.bf16.msra.mxu0 0
        %1174 = vmatpush.bf16.msra.mxu0 0
        %1175 = vmatpush.bf16.msra.mxu0 0
        %1176 = vmatpush.bf16.msra.mxu0 %v1128
        %1177 = vmatpush.bf16.msra.mxu0 %v1124
        %1178 = vmatmul.bf16.gmra.mxu0 %v1140
        %v1179 = vpop.f32.mrf.mxu0
        %v1180 = vadd.f32 %v1092, %v1179
        %v1181 = vpop.f32.mrf.mxu0
        %v1182 = vadd.f32 %v1092, %v1181
        %1183 = vdwg.mxu0
        %1184 = vmatpush.bf16.msra.mxu0 0
        %1185 = vmatpush.bf16.msra.mxu0 0
        %1186 = vmatpush.bf16.msra.mxu0 0
        %1187 = vmatpush.bf16.msra.mxu0 0
        %1188 = vmatpush.bf16.msra.mxu0 0
        %1189 = vmatpush.bf16.msra.mxu0 0
        %1190 = vmatpush.bf16.msra.mxu0 %v1129
        %1191 = vmatpush.bf16.msra.mxu0 %v1125
        %1192 = vmatmul.bf16.gmra.mxu0 %v1140
        %v1193 = vpop.f32.mrf.mxu0
        %v1194 = vadd.f32 %v1093, %v1193
        %v1195 = vpop.f32.mrf.mxu0
        %v1196 = vadd.f32 %v1093, %v1195
        %1197 = vdwg.mxu0
        %v1198 = vmul.f32 %v1152, 0.5
        %v1199 = vmul.f32 %v1166, 0.5
        %v1200 = vmul.f32 %v1180, 0.5
        %v1201 = vmul.f32 %v1194, 0.5
        %v1202 = vmul.f32 %v1154, 0.5
        %v1203 = vmul.f32 %v1168, 0.5
        %v1204 = vmul.f32 %v1182, 0.5
        %v1205 = vmul.f32 %v1196, 0.5
        %v1206 = vmul.f32 %v1152, 0.044715
        %v1207 = vmul.f32 %v1166, 0.044715
        %v1208 = vmul.f32 %v1180, 0.044715
        %v1209 = vmul.f32 %v1194, 0.044715
        %v1210 = vmul.f32 %v1154, 0.044715
        %v1211 = vmul.f32 %v1168, 0.044715
        %v1212 = vmul.f32 %v1182, 0.044715
        %v1213 = vmul.f32 %v1196, 0.044715
        %v1214 = vmul.f32 %v1206, %v1152
        %v1215 = vmul.f32 %v1207, %v1166
        %v1216 = vmul.f32 %v1208, %v1180
        %v1217 = vmul.f32 %v1209, %v1194
        %v1218 = vmul.f32 %v1210, %v1154
        %v1219 = vmul.f32 %v1211, %v1168
        %v1220 = vmul.f32 %v1212, %v1182
        %v1221 = vmul.f32 %v1213, %v1196
        %v1222 = vmul.f32 %v1214, %v1152
        %v1223 = vmul.f32 %v1215, %v1166
        %v1224 = vmul.f32 %v1216, %v1180
        %v1225 = vmul.f32 %v1217, %v1194
        %v1226 = vmul.f32 %v1218, %v1154
        %v1227 = vmul.f32 %v1219, %v1168
        %v1228 = vmul.f32 %v1220, %v1182
        %v1229 = vmul.f32 %v1221, %v1196
        %v1230 = vadd.f32 %v1152, %v1222
        %v1231 = vadd.f32 %v1166, %v1223
        %v1232 = vadd.f32 %v1180, %v1224
        %v1233 = vadd.f32 %v1194, %v1225
        %v1234 = vadd.f32 %v1154, %v1226
        %v1235 = vadd.f32 %v1168, %v1227
        %v1236 = vadd.f32 %v1182, %v1228
        %v1237 = vadd.f32 %v1196, %v1229
        %v1238 = vmul.f32 %v1230, 0.7978846
        %v1239 = vmul.f32 %v1231, 0.7978846
        %v1240 = vmul.f32 %v1232, 0.7978846
        %v1241 = vmul.f32 %v1233, 0.7978846
        %v1242 = vmul.f32 %v1234, 0.7978846
        %v1243 = vmul.f32 %v1235, 0.7978846
        %v1244 = vmul.f32 %v1236, 0.7978846
        %v1245 = vmul.f32 %v1237, 0.7978846
        %v1246 = vtanh.pop %v1238
        %v1247 = vtanh.pop %v1239
        %v1248 = vtanh.pop %v1240
        %v1249 = vtanh.pop %v1241
        %v1250 = vtanh.pop %v1242
        %v1251 = vtanh.pop %v1243
        %v1252 = vtanh.pop %v1244
        %v1253 = vtanh.pop %v1245
        %v1254 = vadd.f32 %v1246, 1.0
        %v1255 = vadd.f32 %v1247, 1.0
        %v1256 = vadd.f32 %v1248, 1.0
        %v1257 = vadd.f32 %v1249, 1.0
        %v1258 = vadd.f32 %v1250, 1.0
        %v1259 = vadd.f32 %v1251, 1.0
        %v1260 = vadd.f32 %v1252, 1.0
        %v1261 = vadd.f32 %v1253, 1.0
        %v1262 = vmul.f32 %v1198, %v1254
        %v1263 = vmul.f32 %v1199, %v1255
        %v1264 = vmul.f32 %v1200, %v1256
        %v1265 = vmul.f32 %v1201, %v1257
        %v1266 = vmul.f32 %v1202, %v1258
        %v1267 = vmul.f32 %v1203, %v1259
        %v1268 = vmul.f32 %v1204, %v1260
        %v1269 = vmul.f32 %v1205, %v1261
        %v1270 = vld [vmem:[#allocation3] sm:$0xff]
        %v1271 = vld [vmem:[#allocation3 + $0x8] sm:$0xff]
        %v1272 = vpack.c.bf16 %v1266, %v1262
        %v1273 = vpack.c.bf16 %v1267, %v1263
        %v1274 = vpack.c.bf16 %v1268, %v1264
        %v1275 = vpack.c.bf16 %v1269, %v1265
        %v1276 = vld [vmem:[%s370] sm:$0xff]
        %v1277 = vld [vmem:[%s370 + $0x8] sm:$0xff]
        %v1278 = vld [vmem:[%s370 + $0x10] sm:$0xff]
        %v1279 = vld [vmem:[%s370 + $0x18] sm:$0xff]
        %v1280 = vld [vmem:[%s370 + $0x20] sm:$0xff]
        %v1281 = vld [vmem:[%s370 + $0x28] sm:$0xff]
        %v1282 = vld [vmem:[%s370 + $0x30] sm:$0xff]
        %v1283 = vld [vmem:[%s370 + $0x38] sm:$0xff]
        %v1292 = vunpack.c.l.b16 %v1276
        %v1293 = vunpack.c.h.b16 %v1276
        %v1294 = vunpack.c.l.b16 %v1277
        %v1295 = vunpack.c.h.b16 %v1277
        %v1296 = vunpack.c.l.b16 %v1278
        %v1297 = vunpack.c.h.b16 %v1278
        %v1298 = vunpack.c.l.b16 %v1279
        %v1299 = vunpack.c.h.b16 %v1279
        %v1300 = vunpack.c.l.b16 %v1280
        %v1301 = vunpack.c.h.b16 %v1280
        %v1302 = vunpack.c.l.b16 %v1281
        %v1303 = vunpack.c.h.b16 %v1281
        %v1304 = vunpack.c.l.b16 %v1282
        %v1305 = vunpack.c.h.b16 %v1282
        %v1306 = vunpack.c.l.b16 %v1283
        %v1307 = vunpack.c.h.b16 %v1283
        %v1308 = vpack.c.b16 %v1296, %v1292
        %v1309 = vpack.c.b16 %v1297, %v1293
        %v1310 = vpack.c.b16 %v1298, %v1294
        %v1311 = vpack.c.b16 %v1299, %v1295
        %v1312 = vpack.c.b16 %v1304, %v1300
        %v1313 = vpack.c.b16 %v1305, %v1301
        %v1314 = vpack.c.b16 %v1306, %v1302
        %v1315 = vpack.c.b16 %v1307, %v1303
        %1324 = vmatpush.bf16.xpose.msra.mxu0 0
        %1325 = vmatpush.bf16.xpose.msra.mxu0 0
        %1326 = vmatpush.bf16.xpose.msra.mxu0 0
        %1327 = vmatpush.bf16.xpose.msra.mxu0 0
        %1328 = vmatpush.bf16.xpose.msra.mxu0 0
        %1329 = vmatpush.bf16.xpose.msra.mxu0 0
        %1330 = vmatpush.bf16.xpose.msra.mxu0 %v1312
        %1331 = vmatpush.bf16.xpose.msra.mxu0 %v1308
        %1332 = vmatmul.bf16.gmra.mxu0 %v1272
        %v1333 = vpop.f32.mrf.mxu0
        %v1334 = vadd.f32 0.0, %v1333
        %v1335 = vpop.f32.mrf.mxu0
        %v1336 = vadd.f32 0.0, %v1335
        %1337 = vdwg.mxu0
        %1338 = vmatpush.bf16.xpose.msra.mxu0 0
        %1339 = vmatpush.bf16.xpose.msra.mxu0 0
        %1340 = vmatpush.bf16.xpose.msra.mxu0 0
        %1341 = vmatpush.bf16.xpose.msra.mxu0 0
        %1342 = vmatpush.bf16.xpose.msra.mxu0 0
        %1343 = vmatpush.bf16.xpose.msra.mxu0 0
        %1344 = vmatpush.bf16.xpose.msra.mxu0 %v1313
        %1345 = vmatpush.bf16.xpose.msra.mxu0 %v1309
        %1346 = vmatmul.bf16.gmra.mxu0 %v1273
        %v1347 = vpop.f32.mrf.mxu0
        %v1348 = vadd.f32 %v1334, %v1347
        %v1349 = vpop.f32.mrf.mxu0
        %v1350 = vadd.f32 %v1336, %v1349
        %1351 = vdwg.mxu0
        %1352 = vmatpush.bf16.xpose.msra.mxu0 0
        %1353 = vmatpush.bf16.xpose.msra.mxu0 0
        %1354 = vmatpush.bf16.xpose.msra.mxu0 0
        %1355 = vmatpush.bf16.xpose.msra.mxu0 0
        %1356 = vmatpush.bf16.xpose.msra.mxu0 0
        %1357 = vmatpush.bf16.xpose.msra.mxu0 0
        %1358 = vmatpush.bf16.xpose.msra.mxu0 %v1314
        %1359 = vmatpush.bf16.xpose.msra.mxu0 %v1310
        %1360 = vmatmul.bf16.gmra.mxu0 %v1274
        %v1361 = vpop.f32.mrf.mxu0
        %v1362 = vadd.f32 %v1348, %v1361
        %v1363 = vpop.f32.mrf.mxu0
        %v1364 = vadd.f32 %v1350, %v1363
        %1365 = vdwg.mxu0
        %1366 = vmatpush.bf16.xpose.msra.mxu0 0
        %1367 = vmatpush.bf16.xpose.msra.mxu0 0
        %1368 = vmatpush.bf16.xpose.msra.mxu0 0
        %1369 = vmatpush.bf16.xpose.msra.mxu0 0
        %1370 = vmatpush.bf16.xpose.msra.mxu0 0
        %1371 = vmatpush.bf16.xpose.msra.mxu0 0
        %1372 = vmatpush.bf16.xpose.msra.mxu0 %v1315
        %1373 = vmatpush.bf16.xpose.msra.mxu0 %v1311
        %1374 = vmatmul.bf16.gmra.mxu0 %v1275
        %v1375 = vpop.f32.mrf.mxu0
        %v1376 = vadd.f32 %v1362, %v1375
        %v1377 = vpop.f32.mrf.mxu0
        %v1378 = vadd.f32 %v1364, %v1377
        %1379 = vdwg.mxu0
        %v1380 = vadd.f32 %v1270, %v1376
        %v1381 = vadd.f32 %v1271, %v1378
        %1382 = vst.msk [vmem:[#allocation3] sm:$0xff] %vm1138, %v1380
        %1383 = vst.msk [vmem:[#allocation3 + $0x8] sm:$0xff] %vm1138, %v1381
        %p1384 = scmp.eq.s32.totalorder %s27, 3
        // Predicated region
        $region73: #{tpu_custom_call.1} parent=51 // pred_check
          %p1385 = pneg %p1384
        $region74: #{tpu_custom_call.1} parent=51 // pred_check_branch
          %1387 = sbr.rel (%p1385) target = $region76
        $region75: #{tpu_custom_call.1} parent=51 // pred_region
          %v1388 = vld [vmem:[#allocation3] sm:$0xff]
          %v1389 = vld [vmem:[#allocation3 + $0x8] sm:$0xff]
          %v1390 = vperm.slane %v413, 6
          %v1391 = vadd.f32 %v1388, %v1390
          %v1392 = vadd.f32 %v1389, %v1390
          %v1393 = vld [vmem:[#allocation2] sm:$0xff]
          %v1394 = vld [vmem:[#allocation2 + $0x8] sm:$0xff]
          %v1395 = vadd.f32 %v1393, %v1391
          %v1396 = vadd.f32 %v1394, %v1392
          %v1397 = vsel %vm1138, %v1395, 0.0
          %1398 = vadd.xlane.f32.xlu0 %v1397
          %v1399 = vpop.xlane.xlu0 %1398
          %v1400 = vsel %vm1138, %v1396, 0.0
          %1401 = vadd.xlane.f32.xlu0 %v1400
          %v1402 = vpop.xlane.xlu0 %1401
          %v1403 = vrcp.pop 32.0
          %v1404 = vmul.f32 32.0, %v1403
          %v1405 = vsub.f32 1.0, %v1404
          %v1406 = vmul.f32 %v1403, %v1405
          %v1407 = vadd.f32 %v1403, %v1406
          %vm1408 = vweird.f32 %v1403
          %v1409 = vsel %vm1408, %v1403, %v1407
          %v1410 = vmul.f32 %v1399, %v1409
          %v1411 = vmul.f32 %v1402, %v1409
          %v1412 = vsub.f32 %v1395, %v1410
          %v1413 = vsub.f32 %v1396, %v1411
          %v1414 = vmul.f32 %v1412, %v1412
          %v1415 = vmul.f32 %v1413, %v1413
          %v1416 = vsel %vm1138, %v1414, 0.0
          %1417 = vadd.xlane.f32.xlu0 %v1416
          %v1418 = vpop.xlane.xlu0 %1417
          %v1419 = vsel %vm1138, %v1415, 0.0
          %1420 = vadd.xlane.f32.xlu0 %v1419
          %v1421 = vpop.xlane.xlu0 %1420
          %v1422 = vmul.f32 %v1418, %v1409
          %v1423 = vmul.f32 %v1421, %v1409
          %v1424 = vadd.f32 %v1422, 1e-05
          %v1425 = vadd.f32 %v1423, 1e-05
          %v1426 = vrsqrt.pop %v1424
          %v1427 = vmul.f32 %v1426, %v1424
          %v1428 = vmul.f32 %v1427, %v1426
          %v1429 = vmul.f32 0.5, %v1428
          %v1430 = vsub.f32 1.5, %v1429
          %v1431 = vmul.f32 %v1426, %v1430
          %vm1432 = vweird.f32 %v1424
          %vm1433 = vweird.f32 %v1426
          %vm1434 = vmor %vm1432, %vm1433
          %v1435 = vsel %vm1434, %v1426, %v1431
          %v1436 = vrsqrt.pop %v1425
          %v1437 = vmul.f32 %v1436, %v1425
          %v1438 = vmul.f32 %v1437, %v1436
          %v1439 = vmul.f32 0.5, %v1438
          %v1440 = vsub.f32 1.5, %v1439
          %v1441 = vmul.f32 %v1436, %v1440
          %vm1442 = vweird.f32 %v1425
          %vm1443 = vweird.f32 %v1436
          %vm1444 = vmor %vm1442, %vm1443
          %v1445 = vsel %vm1444, %v1436, %v1441
          %v1446 = vmul.f32 %v1412, %v1435
          %v1447 = vmul.f32 %v1413, %v1445
          %v1448 = vperm.slane %v413, 7
          %v1449 = vmul.f32 %v1446, %v1448
          %v1450 = vmul.f32 %v1447, %v1448
          %v1451 = vperm.slane %v414, 0
          %v1452 = vadd.f32 %v1449, %v1451
          %v1453 = vadd.f32 %v1450, %v1451
          %v1454 = vld [vmem:[%s2] sm:$0xff]
          %v1455 = vld [vmem:[%s2 + $0x8] sm:$0xff]
          %v1456 = vld [vmem:[%s2 + $0x10] sm:$0xff]
          %v1457 = vld [vmem:[%s2 + $0x18] sm:$0xff]
          %v1458 = vperm.slane %v414, 1
          %v1460 = vsel %vm1138, %v1452, 0
          %v1463 = vsel %vm1138, %v1453, 0
          %1465 = vmatpush.msra.mxu0 0.0
          %1466 = vmatpush.msra.mxu0 0.0
          %1467 = vmatpush.msra.mxu0 0.0
          %1468 = vmatpush.msra.mxu0 0.0
          %1469 = vmatpush.msra.mxu0 0.0
          %1470 = vmatpush.msra.mxu0 0.0
          %1471 = vmatpush.msra.mxu0 0.0
          %1472 = vmatpush.msra.mxu0 0.0
          %1473 = vmatpush.msra.mxu0 0.0
          %1474 = vmatpush.msra.mxu0 0.0
          %1475 = vmatpush.msra.mxu0 0.0
          %1476 = vmatpush.msra.mxu0 0.0
          %1477 = vmatpush.msra.mxu0 %v1457
          %1478 = vmatpush.msra.mxu0 %v1456
          %1479 = vmatpush.msra.mxu0 %v1455
          %1480 = vmatpush.msra.mxu0 %v1454
          %1481 = vmatmul.f32.gmra.mxu0 %v1460
          %v1482 = vpop.f32.mrf.mxu0
          %v1483 = vadd.f32 %v1458, %v1482
          %1484 = vmatmul.f32.gmra.mxu0 %v1463
          %v1485 = vpop.f32.mrf.mxu0
          %v1486 = vadd.f32 %v1458, %v1485
          %1487 = vdwg.mxu0
          %v1488 = vmul.f32 %v1483, 0.5
          %v1489 = vmul.f32 %v1486, 0.5
          %v1490 = vmul.f32 %v1483, 0.044715
          %v1491 = vmul.f32 %v1486, 0.044715
          %v1492 = vmul.f32 %v1490, %v1483
          %v1493 = vmul.f32 %v1491, %v1486
          %v1494 = vmul.f32 %v1492, %v1483
          %v1495 = vmul.f32 %v1493, %v1486
          %v1496 = vadd.f32 %v1483, %v1494
          %v1497 = vadd.f32 %v1486, %v1495
          %v1498 = vmul.f32 %v1496, 0.7978846
          %v1499 = vmul.f32 %v1497, 0.7978846
          %v1500 = vtanh.pop %v1498
          %v1501 = vtanh.pop %v1499
          %v1502 = vadd.f32 %v1500, 1.0
          %v1503 = vadd.f32 %v1501, 1.0
          %v1504 = vmul.f32 %v1488, %v1502
          %v1505 = vmul.f32 %v1489, %v1503
          %v1506 = vperm.slane %v414, 2
          %v1507 = vmul.f32 %v1504, %v1506
          %v1508 = vmul.f32 %v1505, %v1506
          %vm1509 = vcmask 130048
          %v1510 = vsel %vm1509, %v1507, 0.0
          %1511 = vadd.xlane.f32.xlu0 %v1510
          %v1512 = vpop.xlane.xlu0 %1511
          %v1513 = vsel %vm1509, %v1508, 0.0
          %1514 = vadd.xlane.f32.xlu0 %v1513
          %v1515 = vpop.xlane.xlu0 %1514
          %v1516 = vperm.slane %v415, 3
          %v1517 = vadd.f32 %v1512, %v1516
          %v1518 = vadd.f32 %v1515, %v1516
          %v1519 = vxor.u32 %v1517, 2147483648
          %v1520 = vxor.u32 %v1518, 2147483648
          %v1521 = vmul.f32 %v1519, 1.442695
          %v1522 = vpow.pop %v1521
          %v1523 = vmul.f32 %v1520, 1.442695
          %v1524 = vpow.pop %v1523
          %v1525 = vadd.f32 %v1522, 1.0
          %v1526 = vadd.f32 %v1524, 1.0
          %v1527 = vrcp.pop %v1525
          %v1528 = vmul.f32 %v1525, %v1527
          %v1529 = vsub.f32 1.0, %v1528
          %v1530 = vmul.f32 %v1527, %v1529
          %v1531 = vadd.f32 %v1527, %v1530
          %vm1532 = vweird.f32 %v1525
          %vm1533 = vweird.f32 %v1527
          %vm1534 = vmor %vm1532, %vm1533
          %v1535 = vsel %vm1534, %v1527, %v1531
          %v1536 = vand.u32 2147483647, %v1525
          %vm1537 = vcmp.eq.f32.partialorder %v1536, 8.507059e+37
          %v1538 = vand.u32 %v1525, 2147483648
          %v1539 = vor.u32 1.1754944e-38, %v1538
          %v1540 = vsel %vm1537, %v1539, %v1535
          %v1541 = vmul.f32 1.0, %v1540
          %v1542 = vrcp.pop %v1526
          %v1543 = vmul.f32 %v1526, %v1542
          %v1544 = vsub.f32 1.0, %v1543
          %v1545 = vmul.f32 %v1542, %v1544
          %v1546 = vadd.f32 %v1542, %v1545
          %vm1547 = vweird.f32 %v1526
          %vm1548 = vweird.f32 %v1542
          %vm1549 = vmor %vm1547, %vm1548
          %v1550 = vsel %vm1549, %v1542, %v1546
          %v1551 = vand.u32 2147483647, %v1526
          %vm1552 = vcmp.eq.f32.partialorder %v1551, 8.507059e+37
          %v1553 = vand.u32 %v1526, 2147483648
          %v1554 = vor.u32 1.1754944e-38, %v1553
          %v1555 = vsel %vm1552, %v1554, %v1550
          %v1556 = vmul.f32 1.0, %v1555
          %1558 = vset.pattern.permute.xlu0 0
          %1559 = vperm.xlu0 %1558, %v1541
          %v1560 = vpop.permute.xlu0 %1559
          %1563 = vset.pattern.permute.xlu0 0
          %1564 = vperm.xlu0 %1563, %v1556
          %v1565 = vpop.permute.xlu0 %1564
          %v1567 = vmul.f32 %v1452, %v1560
          %v1568 = vmul.f32 %v1453, %v1565
          %v1569 = vperm.slane %v414, 3
          %1574 = vrot.lane.b32.xlu0 %v1454, 112
          %v1575 = vpop.permute.xlu0 %1574
          %1576 = vrot.lane.b32.xlu0 %v1455, 112
          %v1577 = vpop.permute.xlu0 %1576
          %1578 = vrot.lane.b32.xlu0 %v1456, 112
          %v1579 = vpop.permute.xlu0 %1578
          %1580 = vrot.lane.b32.xlu0 %v1457, 112
          %v1581 = vpop.permute.xlu0 %1580
          %v1587 = vsel %vm1138, %v1567, 0
          %v1590 = vsel %vm1138, %v1568, 0
          %1592 = vmatpush.msra.mxu0 0.0
          %1593 = vmatpush.msra.mxu0 0.0
          %1594 = vmatpush.msra.mxu0 0.0
          %1595 = vmatpush.msra.mxu0 0.0
          %1596 = vmatpush.msra.mxu0 0.0
          %1597 = vmatpush.msra.mxu0 0.0
          %1598 = vmatpush.msra.mxu0 0.0
          %1599 = vmatpush.msra.mxu0 0.0
          %1600 = vmatpush.msra.mxu0 0.0
          %1601 = vmatpush.msra.mxu0 0.0
          %1602 = vmatpush.msra.mxu0 0.0
          %1603 = vmatpush.msra.mxu0 0.0
          %1604 = vmatpush.msra.mxu0 %v1581
          %1605 = vmatpush.msra.mxu0 %v1579
          %1606 = vmatpush.msra.mxu0 %v1577
          %1607 = vmatpush.msra.mxu0 %v1575
          %1608 = vmatmul.f32.gmra.mxu0 %v1587
          %v1609 = vpop.f32.mrf.mxu0
          %v1610 = vadd.f32 %v1569, %v1609
          %1611 = vmatmul.f32.gmra.mxu0 %v1590
          %v1612 = vpop.f32.mrf.mxu0
          %v1613 = vadd.f32 %v1569, %v1612
          %1614 = vdwg.mxu0
          %v1615 = vmul.f32 %v1610, 0.5
          %v1616 = vmul.f32 %v1613, 0.5
          %v1617 = vmul.f32 %v1610, 0.044715
          %v1618 = vmul.f32 %v1613, 0.044715
          %v1619 = vmul.f32 %v1617, %v1610
          %v1620 = vmul.f32 %v1618, %v1613
          %v1621 = vmul.f32 %v1619, %v1610
          %v1622 = vmul.f32 %v1620, %v1613
          %v1623 = vadd.f32 %v1610, %v1621
          %v1624 = vadd.f32 %v1613, %v1622
          %v1625 = vmul.f32 %v1623, 0.7978846
          %v1626 = vmul.f32 %v1624, 0.7978846
          %v1627 = vtanh.pop %v1625
          %v1628 = vtanh.pop %v1626
          %v1629 = vadd.f32 %v1627, 1.0
          %v1630 = vadd.f32 %v1628, 1.0
          %v1631 = vmul.f32 %v1615, %v1629
          %v1632 = vmul.f32 %v1616, %v1630
          %v1633 = vperm.slane %v414, 4
          %v1634 = vmul.f32 %v1631, %v1633
          %v1635 = vmul.f32 %v1632, %v1633
          %v1636 = vsel %vm1509, %v1634, 0.0
          %1637 = vadd.xlane.f32.xlu0 %v1636
          %v1638 = vpop.xlane.xlu0 %1637
          %v1639 = vsel %vm1509, %v1635, 0.0
          %1640 = vadd.xlane.f32.xlu0 %v1639
          %v1641 = vpop.xlane.xlu0 %1640
          %v1642 = vadd.f32 %v1638, %v1516
          %v1643 = vadd.f32 %v1641, %v1516
          %v1644 = vperm.slane %v414, 5
          %v1645 = vmul.f32 %v1631, %v1644
          %v1646 = vmul.f32 %v1632, %v1644
          %v1647 = vsel %vm1509, %v1645, 0.0
          %1648 = vadd.xlane.f32.xlu0 %v1647
          %v1649 = vpop.xlane.xlu0 %1648
          %v1650 = vsel %vm1509, %v1646, 0.0
          %1651 = vadd.xlane.f32.xlu0 %v1650
          %v1652 = vpop.xlane.xlu0 %1651
          %v1653 = vadd.f32 %v1649, %v1516
          %v1654 = vadd.f32 %v1652, %v1516
          %1657 = vrot.lane.b32.xlu0 %v1653, 127
          %v1658 = vpop.permute.xlu0 %1657
          %1659 = vrot.lane.b32.xlu0 %v1654, 127
          %v1660 = vpop.permute.xlu0 %1659
          %v1663 = vmax.f32 %v1642, %v1658
          %v1664 = vmax.f32 %v1643, %v1660
          %v1665 = vsub.f32 %v1642, %v1663
          %v1666 = vsub.f32 %v1643, %v1664
          %v1667 = vmul.f32 %v1665, 1.442695
          %v1668 = vpow.pop %v1667
          %v1669 = vmul.f32 %v1666, 1.442695
          %v1670 = vpow.pop %v1669
          %1673 = vrot.lane.b32.xlu0 %v1663, 1
          %v1674 = vpop.permute.xlu0 %1673
          %1675 = vrot.lane.b32.xlu0 %v1664, 1
          %v1676 = vpop.permute.xlu0 %1675
          %v1679 = vsub.f32 %v1653, %v1674
          %v1680 = vsub.f32 %v1654, %v1676
          %v1681 = vmul.f32 %v1679, 1.442695
          %v1682 = vpow.pop %v1681
          %v1683 = vmul.f32 %v1680, 1.442695
          %v1684 = vpow.pop %v1683
          %1687 = vrot.lane.b32.xlu0 %v1682, 127
          %v1688 = vpop.permute.xlu0 %1687
          %1689 = vrot.lane.b32.xlu0 %v1684, 127
          %v1690 = vpop.permute.xlu0 %1689
          %v1693 = vadd.f32 %v1668, %v1688
          %v1694 = vadd.f32 %v1670, %v1690
          %v1695 = vrcp.pop %v1693
          %v1696 = vrcp.pop %v1694
          %v1697 = vmul.f32 %v1668, 1.5
          %v1698 = vmul.f32 %v1670, 1.5
          %v1699 = vmul.f32 %v1682, 0.5
          %v1700 = vmul.f32 %v1684, 0.5
          %1703 = vrot.lane.b32.xlu0 %v1699, 127
          %v1704 = vpop.permute.xlu0 %1703
          %1705 = vrot.lane.b32.xlu0 %v1700, 127
          %v1706 = vpop.permute.xlu0 %1705
          %v1709 = vadd.f32 %v1697, %v1704
          %v1710 = vadd.f32 %v1698, %v1706
          %v1711 = vmul.f32 %v1709, %v1695
          %v1712 = vmul.f32 %v1710, %v1696
          %1714 = vset.pattern.permute.xlu0 1
          %1715 = vperm.xlu0 %1714, %v1711
          %v1716 = vpop.permute.xlu0 %1715
          %1719 = vset.pattern.permute.xlu0 1
          %1720 = vperm.xlu0 %1719, %v1712
          %v1721 = vpop.permute.xlu0 %1720
          %v1723 = vmul.f32 %v1567, %v1716
          %v1724 = vmul.f32 %v1568, %v1721
          %v1725 = vld [vmem:[%s3] sm:$0xff]
          %v1726 = vld [vmem:[%s3 + $0x8] sm:$0xff]
          %v1727 = vld [vmem:[%s3 + $0x10] sm:$0xff]
          %v1728 = vld [vmem:[%s3 + $0x18] sm:$0xff]
          %v1729 = vld [vmem:[%s3 + $0x20] sm:$0xff]
          %v1730 = vld [vmem:[%s3 + $0x28] sm:$0xff]
          %v1731 = vld [vmem:[%s3 + $0x30] sm:$0xff]
          %v1732 = vld [vmem:[%s3 + $0x38] sm:$0xff]
          %1733 = vmatpush.msra.mxu0 0.0
          %1734 = vmatpush.msra.mxu0 0.0
          %1735 = vmatpush.msra.mxu0 0.0
          %1736 = vmatpush.msra.mxu0 0.0
          %1737 = vmatpush.msra.mxu0 0.0
          %1738 = vmatpush.msra.mxu0 0.0
          %1739 = vmatpush.msra.mxu0 0.0
          %1740 = vmatpush.msra.mxu0 0.0
          %1741 = vmatpush.msra.mxu0 0.0
          %1742 = vmatpush.msra.mxu0 0.0
          %1743 = vmatpush.msra.mxu0 0.0
          %1744 = vmatpush.msra.mxu0 0.0
          %1745 = vmatpush.msra.mxu0 %v1732
          %1746 = vmatpush.msra.mxu0 %v1731
          %1747 = vmatpush.msra.mxu0 %v1730
          %1748 = vmatpush.msra.mxu0 %v1729
          %1749 = vmatmul.f32.gmra.mxu0 %v1587
          %v1750 = vpop.f32.mrf.mxu0
          %v1751 = vadd.f32 0.0, %v1750
          %1752 = vmatmul.f32.gmra.mxu0 %v1590
          %v1753 = vpop.f32.mrf.mxu0
          %v1754 = vadd.f32 0.0, %v1753
          %1755 = vdwg.mxu0
          %v1757 = vsel %vm1138, %v1723, 0
          %v1760 = vsel %vm1138, %v1724, 0
          %1762 = vmatpush.msra.mxu0 0.0
          %1763 = vmatpush.msra.mxu0 0.0
          %1764 = vmatpush.msra.mxu0 0.0
          %1765 = vmatpush.msra.mxu0 0.0
          %1766 = vmatpush.msra.mxu0 0.0
          %1767 = vmatpush.msra.mxu0 0.0
          %1768 = vmatpush.msra.mxu0 0.0
          %1769 = vmatpush.msra.mxu0 0.0
          %1770 = vmatpush.msra.mxu0 0.0
          %1771 = vmatpush.msra.mxu0 0.0
          %1772 = vmatpush.msra.mxu0 0.0
          %1773 = vmatpush.msra.mxu0 0.0
          %1774 = vmatpush.msra.mxu0 %v1728
          %1775 = vmatpush.msra.mxu0 %v1727
          %1776 = vmatpush.msra.mxu0 %v1726
          %1777 = vmatpush.msra.mxu0 %v1725
          %1778 = vmatmul.f32.gmra.mxu0 %v1757
          %v1779 = vpop.f32.mrf.mxu0
          %v1780 = vadd.f32 %v1751, %v1779
          %1781 = vmatmul.f32.gmra.mxu0 %v1760
          %v1782 = vpop.f32.mrf.mxu0
          %v1783 = vadd.f32 %v1754, %v1782
          %1784 = vdwg.mxu0
          %v1785 = vperm.slane %v414, 6
          %v1786 = vadd.f32 %v1780, %v1785
          %v1787 = vadd.f32 %v1783, %v1785
          %v1788 = vmul.f32 %v1786, 0.5
          %v1789 = vmul.f32 %v1787, 0.5
          %v1790 = vmul.f32 %v1786, 0.044715
          %v1791 = vmul.f32 %v1787, 0.044715
          %v1792 = vmul.f32 %v1790, %v1786
          %v1793 = vmul.f32 %v1791, %v1787
          %v1794 = vmul.f32 %v1792, %v1786
          %v1795 = vmul.f32 %v1793, %v1787
          %v1796 = vadd.f32 %v1786, %v1794
          %v1797 = vadd.f32 %v1787, %v1795
          %v1798 = vmul.f32 %v1796, 0.7978846
          %v1799 = vmul.f32 %v1797, 0.7978846
          %v1800 = vtanh.pop %v1798
          %v1801 = vtanh.pop %v1799
          %v1802 = vadd.f32 %v1800, 1.0
          %v1803 = vadd.f32 %v1801, 1.0
          %v1804 = vmul.f32 %v1788, %v1802
          %v1805 = vmul.f32 %v1789, %v1803
          %v1806 = vsel %vm1138, %v1804, 0.0
          %1807 = vadd.xlane.f32.xlu0 %v1806
          %v1808 = vpop.xlane.xlu0 %1807
          %v1809 = vsel %vm1138, %v1805, 0.0
          %1810 = vadd.xlane.f32.xlu0 %v1809
          %v1811 = vpop.xlane.xlu0 %1810
          %v1812 = vmul.f32 %v1808, %v1409
          %v1813 = vmul.f32 %v1811, %v1409
          %v1814 = vsub.f32 %v1804, %v1812
          %v1815 = vsub.f32 %v1805, %v1813
          %v1816 = vmul.f32 %v1814, %v1814
          %v1817 = vmul.f32 %v1815, %v1815
          %v1818 = vsel %vm1138, %v1816, 0.0
          %1819 = vadd.xlane.f32.xlu0 %v1818
          %v1820 = vpop.xlane.xlu0 %1819
          %v1821 = vsel %vm1138, %v1817, 0.0
          %1822 = vadd.xlane.f32.xlu0 %v1821
          %v1823 = vpop.xlane.xlu0 %1822
          %v1824 = vmul.f32 %v1820, %v1409
          %v1825 = vmul.f32 %v1823, %v1409
          %v1826 = vadd.f32 %v1824, 1e-05
          %v1827 = vadd.f32 %v1825, 1e-05
          %v1828 = vrsqrt.pop %v1826
          %v1829 = vmul.f32 %v1828, %v1826
          %v1830 = vmul.f32 %v1829, %v1828
          %v1831 = vmul.f32 0.5, %v1830
          %v1832 = vsub.f32 1.5, %v1831
          %v1833 = vmul.f32 %v1828, %v1832
          %vm1834 = vweird.f32 %v1826
          %vm1835 = vweird.f32 %v1828
          %vm1836 = vmor %vm1834, %vm1835
          %v1837 = vsel %vm1836, %v1828, %v1833
          %v1838 = vrsqrt.pop %v1827
          %v1839 = vmul.f32 %v1838, %v1827
          %v1840 = vmul.f32 %v1839, %v1838
          %v1841 = vmul.f32 0.5, %v1840
          %v1842 = vsub.f32 1.5, %v1841
          %v1843 = vmul.f32 %v1838, %v1842
          %vm1844 = vweird.f32 %v1827
          %vm1845 = vweird.f32 %v1838
          %vm1846 = vmor %vm1844, %vm1845
          %v1847 = vsel %vm1846, %v1838, %v1843
          %v1848 = vmul.f32 %v1814, %v1837
          %v1849 = vmul.f32 %v1815, %v1847
          %v1850 = vperm.slane %v414, 7
          %v1851 = vmul.f32 %v1848, %v1850
          %v1852 = vmul.f32 %v1849, %v1850
          %v1853 = vperm.slane %v415, 0
          %v1854 = vadd.f32 %v1851, %v1853
          %v1855 = vadd.f32 %v1852, %v1853
          %v1856 = vsel %vm1138, %v1854, 0.0
          %1857 = vadd.xlane.f32.xlu0 %v1856
          %v1858 = vpop.xlane.xlu0 %1857
          %v1859 = vsel %vm1138, %v1855, 0.0
          %1860 = vadd.xlane.f32.xlu0 %v1859
          %v1861 = vpop.xlane.xlu0 %1860
          %v1862 = vmul.f32 %v1858, %v1409
          %v1863 = vmul.f32 %v1861, %v1409
          %v1864 = vsub.f32 %v1854, %v1862
          %v1865 = vsub.f32 %v1855, %v1863
          %v1866 = vmul.f32 %v1864, %v1864
          %v1867 = vmul.f32 %v1865, %v1865
          %v1868 = vsel %vm1138, %v1866, 0.0
          %1869 = vadd.xlane.f32.xlu0 %v1868
          %v1870 = vpop.xlane.xlu0 %1869
          %v1871 = vsel %vm1138, %v1867, 0.0
          %1872 = vadd.xlane.f32.xlu0 %v1871
          %v1873 = vpop.xlane.xlu0 %1872
          %v1874 = vmul.f32 %v1870, %v1409
          %v1875 = vmul.f32 %v1873, %v1409
          %v1876 = vadd.f32 %v1874, 1e-05
          %v1877 = vadd.f32 %v1875, 1e-05
          %v1878 = vrsqrt.pop %v1876
          %v1879 = vmul.f32 %v1878, %v1876
          %v1880 = vmul.f32 %v1879, %v1878
          %v1881 = vmul.f32 0.5, %v1880
          %v1882 = vsub.f32 1.5, %v1881
          %v1883 = vmul.f32 %v1878, %v1882
          %vm1884 = vweird.f32 %v1876
          %vm1885 = vweird.f32 %v1878
          %vm1886 = vmor %vm1884, %vm1885
          %v1887 = vsel %vm1886, %v1878, %v1883
          %v1888 = vrsqrt.pop %v1877
          %v1889 = vmul.f32 %v1888, %v1877
          %v1890 = vmul.f32 %v1889, %v1888
          %v1891 = vmul.f32 0.5, %v1890
          %v1892 = vsub.f32 1.5, %v1891
          %v1893 = vmul.f32 %v1888, %v1892
          %vm1894 = vweird.f32 %v1877
          %vm1895 = vweird.f32 %v1888
          %vm1896 = vmor %vm1894, %vm1895
          %v1897 = vsel %vm1896, %v1888, %v1893
          %v1898 = vmul.f32 %v1864, %v1887
          %v1899 = vmul.f32 %v1865, %v1897
          %v1900 = vperm.slane %v415, 1
          %v1901 = vmul.f32 %v1898, %v1900
          %v1902 = vmul.f32 %v1899, %v1900
          %v1903 = vperm.slane %v415, 2
          %v1904 = vadd.f32 %v1901, %v1903
          %v1905 = vadd.f32 %v1902, %v1903
          %1906 = vst.msk [vmem:[#allocation12] sm:$0xff] %vm1138, %v1904
          %1907 = vst.msk [vmem:[#allocation12 + $0x8] sm:$0xff] %vm1138, %v1905
        $region76: #{tpu_custom_call.1} parent=51 // pred_fallthru
          _
        // Predicated region
        $region77: #{tpu_custom_call.1} parent=51 // pred_check
          %p1908 = pneg %p223
        $region78: #{tpu_custom_call.1} parent=51 // pred_check_branch
          %1910 = sbr.rel (%p1908) target = $region80
        $region79: #{tpu_custom_call.1} parent=51 // pred_region
          %1912 = vsyncadd [#allocation6], 0
          %s1913 = sshll.u32 [#allocation12], 4
          %s1914 = int_to_ptr.vmem [resolvable:$true] %s1913
          %s1915 = sshll.u32 %s8, 4
          %s1916 = int_to_ptr.hbm [resolvable:$true] %s1915
          %1921 = dma.vmem_to_hbm [thread:$0]  %s1914, 256, %s1916, [#allocation6], 128, 128, 8
        $region80: #{tpu_custom_call.1} parent=51 // pred_fallthru
          _
        // Predicated region
        $region81: #{tpu_custom_call.1} parent=51 // pred_check
          %p1922 = pneg %p223
        $region82: #{tpu_custom_call.1} parent=51 // pred_check_branch
          %1924 = sbr.rel (%p1922) target = $region84
        $region83: #{tpu_custom_call.1} parent=51 // pred_region
          %1926 = dma.done [#allocation6], 256
        $region84: #{tpu_custom_call.1} parent=51 // pred_fallthru
          _
      $region52: #{tpu_custom_call.1} parent=5 // pred_fallthru
        _
      %p1927 = scmp.le.s32.totalorder 2, %s22
      // Predicated region
      $region85: #{tpu_custom_call.1} parent=5 // pred_check
        %p1928 = pneg %p1927
      $region86: #{tpu_custom_call.1} parent=5 // pred_check_branch
        %1930 = sbr.rel (%p1928) target = $region88
      $region87: #{tpu_custom_call.1} parent=5 // pred_region
        %s1931 = ssub.s32 %s22, 2
      $region88: #{tpu_custom_call.1} parent=5 // pred_fallthru
        _
    $region6: #{tpu_custom_call.1} parent=1 // loop_footer
      %s26 = sadd.s32 1, %s22
    $region7: #{tpu_custom_call.1} parent=1 // loop_footer_branch
      %21 = sbr.rel target = $region3
    $region8: #{tpu_custom_call.1} parent=1 // loop_exit
      _
    %1932 = vsyncpa [#allocation5], 1
    %s1933 = scalar_lea.sflag [#allocation5], 1
    %1934 = vsyncpa %s1933, 1
    %1935 = vsyncpa [#allocation8], 1
    %s1936 = scalar_lea.sflag [#allocation8], 1
    %1937 = vsyncpa %s1936, 1
    %1938 = vsyncpa [#allocation11], 1
    %s1939 = scalar_lea.sflag [#allocation11], 1
    %1940 = vsyncpa %s1939, 1
    %1941 = vsyncpa [#allocation6], 1
    %s1942 = scalar_lea.sflag [#allocation6], 1
    %1943 = vsyncpa %s1942, 1

</llo_original>
